<compile_context>
chip_gen: v5e
topology: v5e:2x2
jax: 0.10.0
libtpu: 0.0.40
codegen_flags: <defaults>
</compile_context>

<pallas_src>
import math
from functools import partial

import numpy as np
import jax
import jax.numpy as jnp
from jax.experimental import pallas as pl
from jax.experimental.pallas import tpu as pltpu

EMBED_DIM = 10
HIDDEN = 128
LANES = 128
DENSE_COLS = 7          # the torch module hardcodes nn.Linear(7, 10)


def deepfm_kernel(sp_ref, df_ref, wdb_ref, w1s_ref, w1d_ref, w2_ref,
                  brows_ref, eye_ref, out_ref):
    sp = sp_ref[...]                              # (TB, 10*ns)  bf16
    df = df_ref[...]                              # (TB, 9) f32: [dense(7) | 1 | lin]

    dense8 = df[:, :DENSE_COLS + 1]               # dense cols + constant-1 bias col
    lin = df[:, DENSE_COLS + 1:DENSE_COLS + 2]    # folded 1st-order logit (+ bf + b3)

    # dense-field embedding: Linear(7, 10), bias folded into the matmul
    dense_emb = jnp.dot(dense8, wdb_ref[...],
                        preferred_element_type=jnp.float32)            # (TB, 10)

    # fused MXU pass: [W1_sparse | field-sum matrix] -> (TB, 128 + 10)
    hs = jnp.dot(sp, w1s_ref[...], preferred_element_type=jnp.float32)
    h_sp = hs[:, :HIDDEN]                         # sparse-row part of linear1
    s_sp = hs[:, HIDDEN:HIDDEN + EMBED_DIM]       # per-dim sum over sparse fields

    # FM second-order term (f32 elementwise math)
    s = s_sp + dense_emb                          # per-dim sum over all fields
    sp_f32 = sp.astype(jnp.float32)
    sum_of_square = (jnp.sum(sp_f32 * sp_f32, axis=1, keepdims=True)
                     + jnp.sum(dense_emb * dense_emb, axis=1, keepdims=True))
    fm_logit = 0.5 * (jnp.sum(s * s, axis=1, keepdims=True) - sum_of_square)

    # deep MLP: (10*NF) -> 128 -> 128 -> 1  (bf16 MXU inputs, f32 accumulation)
    brows = brows_ref[...]                        # (3, 128): [b1; b2; w3^T]
    b1 = brows[0:1, :]
    b2 = brows[1:2, :]
    w3 = brows[2:3, :]
    h = h_sp + jnp.dot(dense_emb.astype(jnp.bfloat16), w1d_ref[...],
                       preferred_element_type=jnp.float32) + b1
    h = jnp.maximum(h, 0.0)
    h = jnp.dot(h.astype(jnp.bfloat16), w2_ref[...],
                preferred_element_type=jnp.float32) + b2
    h = jnp.maximum(h, 0.0)
    # final Linear(128, 1): elementwise multiply + lane reduction (b3 folded in lin)
    deep_logit = jnp.sum(h * w3, axis=1, keepdims=True)

    prob = jax.nn.sigmoid(lin + fm_logit + deep_logit)                 # (TB, 1)

    # Lane-dense store: (TB,1) column -> (1,TB) row, 128 lanes at a time, using
    # the preloaded identity (no per-step iota rebuild, no relayout transpose).
    eye = eye_ref[...]                            # (128, 128) f32
    tb = prob.shape[0]
    for c in range(tb // LANES):
        col = prob[c * LANES:(c + 1) * LANES, :]                       # (128, 1)
        row = jnp.sum(col * eye, axis=0, keepdims=True)                # (1, 128)
        out_ref[:, :, c * LANES:(c + 1) * LANES] = row.reshape(1, 1, LANES)


def init_params(key, sparse_col_size, dense_col_size):
    n_sparse = len(sparse_col_size)
    keys = jax.random.split(key, n_sparse + 10)

    emb_tables = []
    for i, cs in enumerate(sparse_col_size):
        bound = 1.0 / math.sqrt(cs)
        emb_tables.append(
            jax.random.uniform(keys[i], (cs, EMBED_DIM), jnp.float32, -bound, bound))

    def linear(kw, kb, fan_in, fan_out):
        bound = 1.0 / math.sqrt(fan_in)
        w = jax.random.uniform(kw, (fan_in, fan_out), jnp.float32, -bound, bound)
        b = jax.random.uniform(kb, (1, fan_out), jnp.float32, -bound, bound)
        return w, b

    k = n_sparse
    wd, bd = linear(keys[k], keys[k + 1], dense_col_size, EMBED_DIM)
    first_order_size = int(sum(sparse_col_size)) + dense_col_size
    wf, bf = linear(keys[k + 2], keys[k + 3], first_order_size, 1)
    total_emb = EMBED_DIM * (n_sparse + 1)
    w1, b1 = linear(keys[k + 4], keys[k + 5], total_emb, HIDDEN)
    w2, b2 = linear(keys[k + 6], keys[k + 7], HIDDEN, HIDDEN)
    w3, b3 = linear(keys[k + 8], keys[k + 9], HIDDEN, 1)

    return dict(emb_tables=emb_tables, wd=wd, bd=bd, wf=wf, bf=bf,
                w1=w1, b1=b1, w2=w2, b2=b2, w3=w3, b3=b3)


def _pick_block_b(batch, requested):
    """Largest multiple-of-128 tile <= requested that still leaves >=2 tiles
    (so the 'parallel' batch axis can shard across v7x's two TensorCores)."""
    requested = max(LANES, (requested // LANES) * LANES)
    if batch <= LANES:
        return LANES
    two_tile = ((batch + 2 * LANES - 1) // (2 * LANES)) * LANES
    return min(requested, two_tile)


@partial(jax.jit, static_argnames=("sparse_col_size", "block_b"))
def deepfm_forward(params, sparse_feature, dense_feature, sparse_col_size,
                   block_b=512):
    if sparse_feature.ndim == 1:
        sparse_feature = sparse_feature.reshape(1, -1)
        dense_feature = dense_feature.reshape(1, -1)
    B = sparse_feature.shape[0]
    n_sparse = len(sparse_col_size)
    total_sparse = int(sum(sparse_col_size))
    dense_feature = dense_feature.astype(jnp.float32)

    # ---- one fused gather on a stacked (sum(vocab), 11) table:
    #      cols 0..9 = embedding row, col 10 = first-order weight wf ----
    offsets = np.concatenate([[0], np.cumsum(sparse_col_size)[:-1]]).astype(np.int32)
    stacked = jnp.concatenate(list(params["emb_tables"]), axis=0)          # (sum, 10)
    wf = params["wf"]                                                      # (sum+7, 1)
    table11 = jnp.concatenate([stacked, wf[:total_sparse, :]], axis=1)     # (sum, 11)
    flat_idx = sparse_feature.astype(jnp.int32) + jnp.asarray(offsets)[None, :]
    gathered = table11[flat_idx]                                           # (B, ns, 11)
    sp_emb = gathered[..., :EMBED_DIM].reshape(B, EMBED_DIM * n_sparse)
    sp_emb = sp_emb.astype(jnp.bfloat16)           # bf16 halves the dominant DMA bytes
    lin_sp = jnp.sum(gathered[..., EMBED_DIM], axis=1, keepdims=True)      # (B, 1)

    # full first-order logit with both scalar biases (bf, b3) folded in
    lin_full = (lin_sp + dense_feature @ wf[total_sparse:, :]
                + params["bf"] + params["b3"])                             # (B, 1)

    # (B, 9) block: [dense(7) | 1.0 (bias column for Linear(7,10)) | lin_full]
    dfeat = jnp.concatenate(
        [dense_feature, jnp.ones((B, 1), jnp.float32), lin_full], axis=1)

    # ---- constant (VMEM-resident) weights ----
    wdb = jnp.concatenate([params["wd"], params["bd"]], axis=0)            # (8, 10) f32
    w1 = params["w1"]
    smat = np.tile(np.eye(EMBED_DIM, dtype=np.float32), (n_sparse, 1))     # (10*ns, 10)
    w1s_aug = jnp.concatenate(
        [w1[:EMBED_DIM * n_sparse], jnp.asarray(smat)], axis=1
    ).astype(jnp.bfloat16)                                                 # (10*ns, 138)
    w1d = w1[EMBED_DIM * n_sparse:].astype(jnp.bfloat16)                   # (10, 128)
    w2 = params["w2"].astype(jnp.bfloat16)                                 # (128, 128)
    brows = jnp.concatenate(
        [params["b1"], params["b2"], params["w3"].T], axis=0)             # (3, 128) f32
    eye = jnp.eye(LANES, dtype=jnp.float32)                                # (128, 128)

    # ---- batch tiling ----
    bb = _pick_block_b(B, block_b)
    n_tiles = (B + bb - 1) // bb
    B_pad = n_tiles * bb
    if B_pad != B:
        pad = B_pad - B
        sp_emb = jnp.pad(sp_emb, ((0, pad), (0, 0)))
        dfeat = jnp.pad(dfeat, ((0, pad), (0, 0)))

    def batch_spec(cols):
        return pl.BlockSpec((bb, cols), lambda i: (i, 0))

    def const_spec(arr):
        return pl.BlockSpec(arr.shape, lambda i: (0, 0))

    weights = (wdb, w1s_aug, w1d, w2, brows, eye)

    out = pl.pallas_call(
        deepfm_kernel,
        out_shape=jax.ShapeDtypeStruct((n_tiles, 1, bb), jnp.float32),
        grid=(n_tiles,),
        in_specs=[batch_spec(sp_emb.shape[1]), batch_spec(dfeat.shape[1])]
                 + [const_spec(w) for w in weights],
        out_specs=pl.BlockSpec((1, 1, bb), lambda i: (i, 0, 0)),
        compiler_params=pltpu.CompilerParams(
            dimension_semantics=("parallel",),
            vmem_limit_bytes=32 * 1024 * 1024),
    )(sp_emb, dfeat, *weights)

    return out.reshape(-1)[:B]      # matches torch .view(-1)


def deepfm_reference(params, sparse_feature, dense_feature, sparse_col_size):
    """Pure-JAX (f32) reference mirroring the torch module."""
    if sparse_feature.ndim == 1:
        sparse_feature = sparse_feature.reshape(1, -1)
        dense_feature = dense_feature.reshape(1, -1)
    dense_feature = dense_feature.astype(jnp.float32)
    one_hot_list, emb_list = [], []
    for i, cs in enumerate(sparse_col_size):
        idx = sparse_feature[:, i]
        one_hot_list.append(jax.nn.one_hot(idx, cs, dtype=jnp.float32))
        emb_list.append(params["emb_tables"][i][idx])
    dense_emb = dense_feature @ params["wd"] + params["bd"]
    one_hot_list.append(dense_feature)
    emb_list.append(dense_emb)
    onehot = jnp.concatenate(one_hot_list, axis=1)
    emb_cat = jnp.concatenate(emb_list, axis=1)
    fm_in = jnp.stack(emb_list, axis=1)
    linear_logit = onehot @ params["wf"] + params["bf"]
    sq_of_sum = jnp.sum(fm_in, axis=1) ** 2
    sum_of_sq = jnp.sum(fm_in ** 2, axis=1)
    fm_logit = 0.5 * jnp.sum(sq_of_sum - sum_of_sq, axis=1, keepdims=True)
    h = jax.nn.relu(emb_cat @ params["w1"] + params["b1"])
    h = jax.nn.relu(h @ params["w2"] + params["b2"])
    deep_logit = h @ params["w3"] + params["b3"]
    return jax.nn.sigmoid(linear_logit + fm_logit + deep_logit).reshape(-1)


if __name__ == "__main__":
    sparse_col_size = (10, 20, 30, 5)   # 4 sparse fields (static tuple for jit)
    dense_col_size = 7                  # module hardcodes Linear(7, 10)
    B = 256                             # 2 batch tiles of 128 (exercises the grid)

    key = jax.random.PRNGKey(0)
    k_sparse, k_dense, k_params = jax.random.split(key, 3)

    cols = [jax.random.randint(jax.random.fold_in(k_sparse, i),
                               (B, 1), 0, cs, dtype=jnp.int32)
            for i, cs in enumerate(sparse_col_size)]
    sparse_feature = jnp.concatenate(cols, axis=1)            # (B, 4) int32
    dense_feature = jax.random.normal(k_dense, (B, dense_col_size), jnp.float32)

    params = init_params(k_params, sparse_col_size, dense_col_size)

    out = deepfm_forward(params, sparse_feature, dense_feature,
                         sparse_col_size=sparse_col_size)
    out = jax.block_until_ready(out)
    assert out.shape == (B,)

    ref = deepfm_reference(params, sparse_feature, dense_feature, sparse_col_size)
    max_err = float(jnp.max(jnp.abs(out - ref)))
    assert max_err < 5e-2, f"max abs error vs reference: {max_err}"
    print("KERNEL_OK")
</pallas_src>

<mosaic_0001>
module attributes {stable_mosaic.version = 11 : i64} {
  func.func @deepfm_kernel(%arg0: i32, %arg1: memref<128x40xbf16, #tpu.memory_space<vmem>>, %arg2: memref<128x9xf32, #tpu.memory_space<vmem>>, %arg3: memref<8x10xf32, #tpu.memory_space<vmem>>, %arg4: memref<40x138xbf16, #tpu.memory_space<vmem>>, %arg5: memref<10x128xbf16, #tpu.memory_space<vmem>>, %arg6: memref<128x128xbf16, #tpu.memory_space<vmem>>, %arg7: memref<3x128xf32, #tpu.memory_space<vmem>>, %arg8: memref<128x128xf32, #tpu.memory_space<vmem>>, %arg9: memref<1x1x128xf32, #tpu.memory_space<vmem>>) attributes {dimension_semantics = [#tpu.dimension_semantics<parallel>], iteration_bounds = array<i64: 2>, scalar_prefetch = 0 : i64, scratch_operands = 0 : i64, tpu.core_type = #tpu.core_type<tc>, window_params = [{transform_indices = @transform_0, window_bounds = array<i64: 128, 40>}, {transform_indices = @transform_1, window_bounds = array<i64: 128, 9>}, {pipeline_mode = #tpu.pipeline_mode<synchronous>, transform_indices = @transform_2, window_bounds = array<i64: 8, 10>}, {pipeline_mode = #tpu.pipeline_mode<synchronous>, transform_indices = @transform_3, window_bounds = array<i64: 40, 138>}, {pipeline_mode = #tpu.pipeline_mode<synchronous>, transform_indices = @transform_4, window_bounds = array<i64: 10, 128>}, {pipeline_mode = #tpu.pipeline_mode<synchronous>, transform_indices = @transform_5, window_bounds = array<i64: 128, 128>}, {pipeline_mode = #tpu.pipeline_mode<synchronous>, transform_indices = @transform_6, window_bounds = array<i64: 3, 128>}, {pipeline_mode = #tpu.pipeline_mode<synchronous>, transform_indices = @transform_7, window_bounds = array<i64: 128, 128>}, {transform_indices = @transform_8, window_bounds = array<i64: 1, 1, 128>}]} {
    %c0 = arith.constant 0 : index
    %c0_0 = arith.constant 0 : index
    %0 = vector.load %arg1[%c0, %c0_0] : memref<128x40xbf16, #tpu.memory_space<vmem>>, vector<128x40xbf16>
    %c0_1 = arith.constant 0 : index
    %c0_2 = arith.constant 0 : index
    %1 = vector.load %arg2[%c0_1, %c0_2] : memref<128x9xf32, #tpu.memory_space<vmem>>, vector<128x9xf32>
    %2 = vector.extract_strided_slice %1 {offsets = [0, 0], sizes = [128, 8], strides = [1, 1]} : vector<128x9xf32> to vector<128x8xf32>
    %3 = vector.extract_strided_slice %1 {offsets = [0, 8], sizes = [128, 1], strides = [1, 1]} : vector<128x9xf32> to vector<128x1xf32>
    %c0_3 = arith.constant 0 : index
    %c0_4 = arith.constant 0 : index
    %4 = vector.load %arg3[%c0_3, %c0_4] : memref<8x10xf32, #tpu.memory_space<vmem>>, vector<8x10xf32>
    %cst = arith.constant dense<0.000000e+00> : vector<128x10xf32>
    %5 = tpu.matmul %2, %4, %cst {dimension_numbers = #tpu.dot_dimension_numbers<[1], [0], [0], [1], [0, 0, 1, 1], [], []>} : vector<128x8xf32>, vector<8x10xf32>, vector<128x10xf32> -> vector<128x10xf32>
    %c0_5 = arith.constant 0 : index
    %c0_6 = arith.constant 0 : index
    %6 = vector.load %arg4[%c0_5, %c0_6] : memref<40x138xbf16, #tpu.memory_space<vmem>>, vector<40x138xbf16>
    %cst_7 = arith.constant dense<0.000000e+00> : vector<128x138xf32>
    %7 = tpu.matmul %0, %6, %cst_7 {dimension_numbers = #tpu.dot_dimension_numbers<[1], [0], [0], [1], [0, 0, 1, 1], [], []>} : vector<128x40xbf16>, vector<40x138xbf16>, vector<128x138xf32> -> vector<128x138xf32>
    %8 = vector.extract_strided_slice %7 {offsets = [0, 0], sizes = [128, 128], strides = [1, 1]} : vector<128x138xf32> to vector<128x128xf32>
    %9 = vector.extract_strided_slice %7 {offsets = [0, 128], sizes = [128, 10], strides = [1, 1]} : vector<128x138xf32> to vector<128x10xf32>
    %10 = arith.addf %9, %5 : vector<128x10xf32>
    %11 = arith.extf %0 : vector<128x40xbf16> to vector<128x40xf32>
    %12 = arith.mulf %11, %11 : vector<128x40xf32>
    %cst_8 = arith.constant dense<0.000000e+00> : vector<128xf32>
    %13 = vector.multi_reduction <add>, %12, %cst_8 [1] : vector<128x40xf32> to vector<128xf32>
    %14 = vector.shape_cast %13 : vector<128xf32> to vector<128x1xf32>
    %15 = arith.mulf %5, %5 : vector<128x10xf32>
    %cst_9 = arith.constant dense<0.000000e+00> : vector<128xf32>
    %16 = vector.multi_reduction <add>, %15, %cst_9 [1] : vector<128x10xf32> to vector<128xf32>
    %17 = vector.shape_cast %16 : vector<128xf32> to vector<128x1xf32>
    %18 = arith.addf %14, %17 : vector<128x1xf32>
    %19 = arith.mulf %10, %10 : vector<128x10xf32>
    %cst_10 = arith.constant dense<0.000000e+00> : vector<128xf32>
    %20 = vector.multi_reduction <add>, %19, %cst_10 [1] : vector<128x10xf32> to vector<128xf32>
    %21 = vector.shape_cast %20 : vector<128xf32> to vector<128x1xf32>
    %22 = arith.subf %21, %18 : vector<128x1xf32>
    %cst_11 = arith.constant 5.000000e-01 : f32
    %23 = vector.broadcast %cst_11 : f32 to vector<128x1xf32>
    %24 = arith.mulf %23, %22 : vector<128x1xf32>
    %c0_12 = arith.constant 0 : index
    %c0_13 = arith.constant 0 : index
    %25 = vector.load %arg7[%c0_12, %c0_13] : memref<3x128xf32, #tpu.memory_space<vmem>>, vector<3x128xf32>
    %26 = vector.extract_strided_slice %25 {offsets = [0, 0], sizes = [1, 128], strides = [1, 1]} : vector<3x128xf32> to vector<1x128xf32>
    %27 = vector.extract_strided_slice %25 {offsets = [1, 0], sizes = [1, 128], strides = [1, 1]} : vector<3x128xf32> to vector<1x128xf32>
    %28 = vector.extract_strided_slice %25 {offsets = [2, 0], sizes = [1, 128], strides = [1, 1]} : vector<3x128xf32> to vector<1x128xf32>
    %29 = arith.truncf %5 : vector<128x10xf32> to vector<128x10xbf16>
    %c0_14 = arith.constant 0 : index
    %c0_15 = arith.constant 0 : index
    %30 = vector.load %arg5[%c0_14, %c0_15] : memref<10x128xbf16, #tpu.memory_space<vmem>>, vector<10x128xbf16>
    %cst_16 = arith.constant dense<0.000000e+00> : vector<128x128xf32>
    %31 = tpu.matmul %29, %30, %cst_16 {dimension_numbers = #tpu.dot_dimension_numbers<[1], [0], [0], [1], [0, 0, 1, 1], [], []>} : vector<128x10xbf16>, vector<10x128xbf16>, vector<128x128xf32> -> vector<128x128xf32>
    %32 = arith.addf %8, %31 : vector<128x128xf32>
    %33 = vector.broadcast %26 : vector<1x128xf32> to vector<128x128xf32>
    %34 = arith.addf %32, %33 : vector<128x128xf32>
    %cst_17 = arith.constant 0.000000e+00 : f32
    %35 = vector.broadcast %cst_17 : f32 to vector<128x128xf32>
    %36 = arith.maximumf %34, %35 : vector<128x128xf32>
    %37 = arith.truncf %36 : vector<128x128xf32> to vector<128x128xbf16>
    %c0_18 = arith.constant 0 : index
    %c0_19 = arith.constant 0 : index
    %38 = vector.load %arg6[%c0_18, %c0_19] : memref<128x128xbf16, #tpu.memory_space<vmem>>, vector<128x128xbf16>
    %cst_20 = arith.constant dense<0.000000e+00> : vector<128x128xf32>
    %39 = tpu.matmul %37, %38, %cst_20 {dimension_numbers = #tpu.dot_dimension_numbers<[1], [0], [0], [1], [0, 0, 1, 1], [], []>} : vector<128x128xbf16>, vector<128x128xbf16>, vector<128x128xf32> -> vector<128x128xf32>
    %40 = vector.broadcast %27 : vector<1x128xf32> to vector<128x128xf32>
    %41 = arith.addf %39, %40 : vector<128x128xf32>
    %cst_21 = arith.constant 0.000000e+00 : f32
    %42 = vector.broadcast %cst_21 : f32 to vector<128x128xf32>
    %43 = arith.maximumf %41, %42 : vector<128x128xf32>
    %44 = vector.broadcast %28 : vector<1x128xf32> to vector<128x128xf32>
    %45 = arith.mulf %43, %44 : vector<128x128xf32>
    %cst_22 = arith.constant dense<0.000000e+00> : vector<128xf32>
    %46 = vector.multi_reduction <add>, %45, %cst_22 [1] : vector<128x128xf32> to vector<128xf32>
    %47 = vector.shape_cast %46 : vector<128xf32> to vector<128x1xf32>
    %48 = arith.addf %3, %24 : vector<128x1xf32>
    %49 = arith.addf %48, %47 : vector<128x1xf32>
    %50 = arith.negf %49 : vector<128x1xf32>
    %51 = math.exp %50 : vector<128x1xf32>
    %cst_23 = arith.constant 1.000000e+00 : f32
    %52 = vector.broadcast %cst_23 : f32 to vector<128x1xf32>
    %53 = arith.addf %52, %51 : vector<128x1xf32>
    %54 = arith.divf %52, %53 : vector<128x1xf32>
    %c0_24 = arith.constant 0 : index
    %c0_25 = arith.constant 0 : index
    %55 = vector.load %arg8[%c0_24, %c0_25] : memref<128x128xf32, #tpu.memory_space<vmem>>, vector<128x128xf32>
    %56 = vector.broadcast %54 : vector<128x1xf32> to vector<128x128xf32>
    %57 = arith.mulf %56, %55 : vector<128x128xf32>
    %cst_26 = arith.constant dense<0.000000e+00> : vector<128xf32>
    %58 = vector.multi_reduction <add>, %57, %cst_26 [0] : vector<128x128xf32> to vector<128xf32>
    %59 = vector.shape_cast %58 : vector<128xf32> to vector<1x128xf32>
    %60 = vector.shape_cast %59 : vector<1x128xf32> to vector<1x1x128xf32>
    %c0_27 = arith.constant 0 : index
    %c0_28 = arith.constant 0 : index
    %c0_29 = arith.constant 0 : index
    %61 = vector.load %arg9[%c0_27, %c0_28, %c0_29] : memref<1x1x128xf32, #tpu.memory_space<vmem>>, vector<1x1x128xf32>
    tpu.vector_store %arg9[%c0_27, %c0_28, %c0_29], %60 {strides = array<i32>} : memref<1x1x128xf32, #tpu.memory_space<vmem>>, vector<1x1x128xf32>,
    return
  }
  func.func @transform_0(%arg0: i32) -> (i32, i32) {
    %c0_i32 = arith.constant 0 : i32
    %c0_i32_0 = arith.constant 0 : i32
    return %arg0, %c0_i32 : i32, i32
  }
  func.func @transform_1(%arg0: i32) -> (i32, i32) {
    %c0_i32 = arith.constant 0 : i32
    %c0_i32_0 = arith.constant 0 : i32
    return %arg0, %c0_i32 : i32, i32
  }
  func.func @transform_2(%arg0: i32) -> (i32, i32) {
    %c0_i32 = arith.constant 0 : i32
    %c0_i32_0 = arith.constant 0 : i32
    %c0_i32_1 = arith.constant 0 : i32
    return %c0_i32, %c0_i32_0 : i32, i32
  }
  func.func @transform_3(%arg0: i32) -> (i32, i32) {
    %c0_i32 = arith.constant 0 : i32
    %c0_i32_0 = arith.constant 0 : i32
    %c0_i32_1 = arith.constant 0 : i32
    return %c0_i32, %c0_i32_0 : i32, i32
  }
  func.func @transform_4(%arg0: i32) -> (i32, i32) {
    %c0_i32 = arith.constant 0 : i32
    %c0_i32_0 = arith.constant 0 : i32
    %c0_i32_1 = arith.constant 0 : i32
    return %c0_i32, %c0_i32_0 : i32, i32
  }
  func.func @transform_5(%arg0: i32) -> (i32, i32) {
    %c0_i32 = arith.constant 0 : i32
    %c0_i32_0 = arith.constant 0 : i32
    %c0_i32_1 = arith.constant 0 : i32
    return %c0_i32, %c0_i32_0 : i32, i32
  }
  func.func @transform_6(%arg0: i32) -> (i32, i32) {
    %c0_i32 = arith.constant 0 : i32
    %c0_i32_0 = arith.constant 0 : i32
    %c0_i32_1 = arith.constant 0 : i32
    return %c0_i32, %c0_i32_0 : i32, i32
  }
  func.func @transform_7(%arg0: i32) -> (i32, i32) {
    %c0_i32 = arith.constant 0 : i32
    %c0_i32_0 = arith.constant 0 : i32
    %c0_i32_1 = arith.constant 0 : i32
    return %c0_i32, %c0_i32_0 : i32, i32
  }
  func.func @transform_8(%arg0: i32) -> (i32, i32, i32) {
    %c0_i32 = arith.constant 0 : i32
    %c0_i32_0 = arith.constant 0 : i32
    %c0_i32_1 = arith.constant 0 : i32
    return %arg0, %c0_i32, %c0_i32_0 : i32, i32, i32
  }
}

</mosaic_0001>

<llo_original>
// kernel: deepfm_forward.1
$region0: #{deepfm_forward.1}
  #allocation0 [shape = 'u32[]', space=smem, size = 0x4, offset = 0x4, fixed_abs, tag = 'smem constant byte address 0x4 - core index']
  #allocation1 [shape = 'u32[72,128]{1,0:T(1,128)}', space=vmem, size = 0x9000, scoped, tag = 'internal scratch']
  %s0 = inlined_call_operand.vmem [shape: bf16[256,40], index: 0, kind: input, shape index: {}]
  %s1 = inlined_call_operand.vmem [shape: f32[256,9], index: 1, kind: input, shape index: {}]
  %s2 = inlined_call_operand.vmem [shape: f32[8,10], index: 2, kind: input, shape index: {}]
  %s3 = inlined_call_operand.vmem [shape: bf16[40,138], index: 3, kind: input, shape index: {}]
  %s4 = inlined_call_operand.vmem [shape: bf16[10,128], index: 4, kind: input, shape index: {}]
  %s5 = inlined_call_operand.vmem [shape: bf16[128,128], index: 5, kind: input, shape index: {}]
  %s6 = inlined_call_operand.vmem [shape: f32[3,128], index: 6, kind: input, shape index: {}]
  %s7 = inlined_call_operand.vmem [shape: f32[128,128], index: 7, kind: input, shape index: {}]
  %s8 = inlined_call_operand.hbm [shape: f32[2,1,128], index: 8, kind: output, shape index: {}]
  %s9 = sld [smem:[#allocation0]]
  $region65: #{deepfm_forward.1} parent=0
    _
  %s11 = ssub.s32 1, %s9
  %s12 = scalar_select 0, %s11, %s9
  $region1: #{deepfm_forward.1} parent=0
    #allocation2 [shape = 'u8[1024]{0}', space=vmem, size = 0x400, scoped, tag = 'output window, operand 0']
    #allocation3 [shape = 's32[2]{0}', space=sflag, size = 0x8, scoped, tag = 'scoped memory for deepfm_forward.1']
    %13 = vsyncpa [#allocation3], 0
    %s14 = scalar_lea.sflag [#allocation3], 1
    %15 = vsyncpa %s14, 0
    loop: start=0, step=1, limit=4
    $region2: #{deepfm_forward.1} parent=1 // loop_pre_header
      _
    $region3: #{deepfm_forward.1} parent=1 // loop_header
      %s17 = sphi 0, %s21
      %p18 = scmp.ge.s32.totalorder %s17, 4
      %s27 = sphi 0, %s29
      %s30 = sphi 0, %s27
      %s31 = sphi 0, %s30
      %s47 = sphi 0, %s31
      %s53 = sphi 0, %s55
      %s56 = sphi 0, %s53
      %s57 = sphi 0, %s56
      %s73 = sphi 0, %s57
      %s77 = sphi 0, %s77
      %s79 = sphi 0, %s77
      %s80 = sphi 0, %s79
      %s94 = sphi 0, %s80
      %s98 = sphi 0, %s98
      %s100 = sphi 0, %s98
      %s101 = sphi 0, %s100
      %s115 = sphi 0, %s101
      %s119 = sphi 0, %s119
      %s121 = sphi 0, %s119
      %s122 = sphi 0, %s121
      %s136 = sphi 0, %s122
      %s140 = sphi 0, %s140
      %s142 = sphi 0, %s140
      %s143 = sphi 0, %s142
      %s157 = sphi 0, %s143
      %s161 = sphi 0, %s161
      %s163 = sphi 0, %s161
      %s164 = sphi 0, %s163
      %s178 = sphi 0, %s164
      %s182 = sphi 0, %s182
      %s184 = sphi 0, %s182
      %s185 = sphi 0, %s184
      %s199 = sphi 0, %s185
      %s205 = sphi 0, %s207
      %s208 = sphi 0, %s205
      %s209 = sphi 0, %s208
      %s225 = sphi 0, %s209
    $region4: #{deepfm_forward.1} parent=1 // loop_header_branch
      %20 = sbr.rel (%p18) target = $region8
    $region5: #{deepfm_forward.1} parent=1 // loop_body
      %s22 = ssub.s32 %s17, 1
      %s23 = ssub.s32 %s17, 2
      %s24 = sadd.s32 %s17, 1
      %s25 = ssub.s32 %s17, %s24
      %p26 = scmp.eq.s32.totalorder %s25, 0
      %s28 = sadd.s32 %s27, 1
      %s29 = scalar_select %p26, %s27, %s28
      %p32 = pneg %p26
      %p33 = scmp.eq.s32.totalorder %s17, 1
      %p34 = por %p32, %p33
      %p35 = scmp.ne.s32.totalorder %s27, %s30
      %p36 = scmp.eq.s32.totalorder %s17, 0
      %p37 = por %p35, %p36
      %p38 = scmp.ne.s32.totalorder %s27, %s30
      %p39 = scmp.eq.s32.totalorder %s22, 1
      %p40 = por %p38, %p39
      %p41 = scmp.ne.s32.totalorder %s30, %s31
      %p42 = scmp.eq.s32.totalorder %s22, 0
      %p43 = por %p41, %p42
      %p44 = scmp.ne.s32.totalorder %s30, %s31
      %p45 = scmp.eq.s32.totalorder %s23, 1
      %p46 = por %p44, %p45
      %p48 = scmp.ne.s32.totalorder %s31, %s47
      %p49 = scmp.eq.s32.totalorder %s23, 0
      %p50 = por %p48, %p49
      %s51 = ssub.s32 %s17, %s24
      %p52 = scmp.eq.s32.totalorder %s51, 0
      %s54 = sadd.s32 %s53, 1
      %s55 = scalar_select %p52, %s53, %s54
      %p58 = pneg %p52
      %p59 = scmp.eq.s32.totalorder %s17, 1
      %p60 = por %p58, %p59
      %p61 = scmp.ne.s32.totalorder %s53, %s56
      %p62 = scmp.eq.s32.totalorder %s17, 0
      %p63 = por %p61, %p62
      %p64 = scmp.ne.s32.totalorder %s53, %s56
      %p65 = scmp.eq.s32.totalorder %s22, 1
      %p66 = por %p64, %p65
      %p67 = scmp.ne.s32.totalorder %s56, %s57
      %p68 = scmp.eq.s32.totalorder %s22, 0
      %p69 = por %p67, %p68
      %p70 = scmp.ne.s32.totalorder %s56, %s57
      %p71 = scmp.eq.s32.totalorder %s23, 1
      %p72 = por %p70, %p71
      %p74 = scmp.ne.s32.totalorder %s57, %s73
      %p75 = scmp.eq.s32.totalorder %s23, 0
      %p76 = por %p74, %p75
      %s78 = sadd.s32 %s77, 1
      %p81 = scmp.eq.s32.totalorder %s17, 1
      %p82 = scmp.ne.s32.totalorder %s77, %s79
      %p83 = scmp.eq.s32.totalorder %s17, 0
      %p84 = por %p82, %p83
      %p85 = scmp.ne.s32.totalorder %s77, %s79
      %p86 = scmp.eq.s32.totalorder %s22, 1
      %p87 = por %p85, %p86
      %p88 = scmp.ne.s32.totalorder %s79, %s80
      %p89 = scmp.eq.s32.totalorder %s22, 0
      %p90 = por %p88, %p89
      %p91 = scmp.ne.s32.totalorder %s79, %s80
      %p92 = scmp.eq.s32.totalorder %s23, 1
      %p93 = por %p91, %p92
      %p95 = scmp.ne.s32.totalorder %s80, %s94
      %p96 = scmp.eq.s32.totalorder %s23, 0
      %p97 = por %p95, %p96
      %s99 = sadd.s32 %s98, 1
      %p102 = scmp.eq.s32.totalorder %s17, 1
      %p103 = scmp.ne.s32.totalorder %s98, %s100
      %p104 = scmp.eq.s32.totalorder %s17, 0
      %p105 = por %p103, %p104
      %p106 = scmp.ne.s32.totalorder %s98, %s100
      %p107 = scmp.eq.s32.totalorder %s22, 1
      %p108 = por %p106, %p107
      %p109 = scmp.ne.s32.totalorder %s100, %s101
      %p110 = scmp.eq.s32.totalorder %s22, 0
      %p111 = por %p109, %p110
      %p112 = scmp.ne.s32.totalorder %s100, %s101
      %p113 = scmp.eq.s32.totalorder %s23, 1
      %p114 = por %p112, %p113
      %p116 = scmp.ne.s32.totalorder %s101, %s115
      %p117 = scmp.eq.s32.totalorder %s23, 0
      %p118 = por %p116, %p117
      %s120 = sadd.s32 %s119, 1
      %p123 = scmp.eq.s32.totalorder %s17, 1
      %p124 = scmp.ne.s32.totalorder %s119, %s121
      %p125 = scmp.eq.s32.totalorder %s17, 0
      %p126 = por %p124, %p125
      %p127 = scmp.ne.s32.totalorder %s119, %s121
      %p128 = scmp.eq.s32.totalorder %s22, 1
      %p129 = por %p127, %p128
      %p130 = scmp.ne.s32.totalorder %s121, %s122
      %p131 = scmp.eq.s32.totalorder %s22, 0
      %p132 = por %p130, %p131
      %p133 = scmp.ne.s32.totalorder %s121, %s122
      %p134 = scmp.eq.s32.totalorder %s23, 1
      %p135 = por %p133, %p134
      %p137 = scmp.ne.s32.totalorder %s122, %s136
      %p138 = scmp.eq.s32.totalorder %s23, 0
      %p139 = por %p137, %p138
      %s141 = sadd.s32 %s140, 1
      %p144 = scmp.eq.s32.totalorder %s17, 1
      %p145 = scmp.ne.s32.totalorder %s140, %s142
      %p146 = scmp.eq.s32.totalorder %s17, 0
      %p147 = por %p145, %p146
      %p148 = scmp.ne.s32.totalorder %s140, %s142
      %p149 = scmp.eq.s32.totalorder %s22, 1
      %p150 = por %p148, %p149
      %p151 = scmp.ne.s32.totalorder %s142, %s143
      %p152 = scmp.eq.s32.totalorder %s22, 0
      %p153 = por %p151, %p152
      %p154 = scmp.ne.s32.totalorder %s142, %s143
      %p155 = scmp.eq.s32.totalorder %s23, 1
      %p156 = por %p154, %p155
      %p158 = scmp.ne.s32.totalorder %s143, %s157
      %p159 = scmp.eq.s32.totalorder %s23, 0
      %p160 = por %p158, %p159
      %s162 = sadd.s32 %s161, 1
      %p165 = scmp.eq.s32.totalorder %s17, 1
      %p166 = scmp.ne.s32.totalorder %s161, %s163
      %p167 = scmp.eq.s32.totalorder %s17, 0
      %p168 = por %p166, %p167
      %p169 = scmp.ne.s32.totalorder %s161, %s163
      %p170 = scmp.eq.s32.totalorder %s22, 1
      %p171 = por %p169, %p170
      %p172 = scmp.ne.s32.totalorder %s163, %s164
      %p173 = scmp.eq.s32.totalorder %s22, 0
      %p174 = por %p172, %p173
      %p175 = scmp.ne.s32.totalorder %s163, %s164
      %p176 = scmp.eq.s32.totalorder %s23, 1
      %p177 = por %p175, %p176
      %p179 = scmp.ne.s32.totalorder %s164, %s178
      %p180 = scmp.eq.s32.totalorder %s23, 0
      %p181 = por %p179, %p180
      %s183 = sadd.s32 %s182, 1
      %p186 = scmp.eq.s32.totalorder %s17, 1
      %p187 = scmp.ne.s32.totalorder %s182, %s184
      %p188 = scmp.eq.s32.totalorder %s17, 0
      %p189 = por %p187, %p188
      %p190 = scmp.ne.s32.totalorder %s182, %s184
      %p191 = scmp.eq.s32.totalorder %s22, 1
      %p192 = por %p190, %p191
      %p193 = scmp.ne.s32.totalorder %s184, %s185
      %p194 = scmp.eq.s32.totalorder %s22, 0
      %p195 = por %p193, %p194
      %p196 = scmp.ne.s32.totalorder %s184, %s185
      %p197 = scmp.eq.s32.totalorder %s23, 1
      %p198 = por %p196, %p197
      %p200 = scmp.ne.s32.totalorder %s185, %s199
      %p201 = scmp.eq.s32.totalorder %s23, 0
      %p202 = por %p200, %p201
      %s203 = ssub.s32 %s17, %s24
      %p204 = scmp.eq.s32.totalorder %s203, 0
      %s206 = sadd.s32 %s205, 1
      %s207 = scalar_select %p204, %s205, %s206
      %p210 = pneg %p204
      %p211 = scmp.eq.s32.totalorder %s17, 1
      %p212 = por %p210, %p211
      %p213 = scmp.ne.s32.totalorder %s205, %s208
      %p214 = scmp.eq.s32.totalorder %s17, 0
      %p215 = por %p213, %p214
      %p216 = scmp.ne.s32.totalorder %s205, %s208
      %p217 = scmp.eq.s32.totalorder %s22, 1
      %p218 = por %p216, %p217
      %p219 = scmp.ne.s32.totalorder %s208, %s209
      %p220 = scmp.eq.s32.totalorder %s22, 0
      %p221 = por %p219, %p220
      %p222 = scmp.ne.s32.totalorder %s208, %s209
      %p223 = scmp.eq.s32.totalorder %s23, 1
      %p224 = por %p222, %p223
      %p226 = scmp.ne.s32.totalorder %s209, %s225
      %p227 = scmp.eq.s32.totalorder %s23, 0
      %p228 = por %p226, %p227
      %p229 = scmp.le.s32.totalorder 1, %s17
      %p230 = scmp.lt.s32.totalorder %s17, 3
      %p231 = pnand %p229, %p230
      %p232 = pneg %p231
      // Predicated region
      $region9: #{deepfm_forward.1} parent=5 // pred_check
        _
      $region10: #{deepfm_forward.1} parent=5 // pred_check_branch
        %234 = sbr.rel (%p231) target = $region12
      $region11: #{deepfm_forward.1} parent=5 // pred_region
        %s235 = ssub.s32 %s17, 1
        // Predicated region
        $region13: #{deepfm_forward.1} parent=11 // pred_check
          %p236 = pneg %p90
        $region14: #{deepfm_forward.1} parent=11 // pred_check_branch
          %238 = sbr.rel (%p236) target = $region16
        $region15: #{deepfm_forward.1} parent=11 // pred_region
          _
        $region16: #{deepfm_forward.1} parent=11 // pred_fallthru
          _
        // Predicated region
        $region17: #{deepfm_forward.1} parent=11 // pred_check
          %p239 = pneg %p111
        $region18: #{deepfm_forward.1} parent=11 // pred_check_branch
          %241 = sbr.rel (%p239) target = $region20
        $region19: #{deepfm_forward.1} parent=11 // pred_region
          _
        $region20: #{deepfm_forward.1} parent=11 // pred_fallthru
          _
        // Predicated region
        $region21: #{deepfm_forward.1} parent=11 // pred_check
          %p242 = pneg %p132
        $region22: #{deepfm_forward.1} parent=11 // pred_check_branch
          %244 = sbr.rel (%p242) target = $region24
        $region23: #{deepfm_forward.1} parent=11 // pred_region
          _
        $region24: #{deepfm_forward.1} parent=11 // pred_fallthru
          _
        // Predicated region
        $region25: #{deepfm_forward.1} parent=11 // pred_check
          %p245 = pneg %p153
        $region26: #{deepfm_forward.1} parent=11 // pred_check_branch
          %247 = sbr.rel (%p245) target = $region28
        $region27: #{deepfm_forward.1} parent=11 // pred_region
          _
        $region28: #{deepfm_forward.1} parent=11 // pred_fallthru
          _
        // Predicated region
        $region29: #{deepfm_forward.1} parent=11 // pred_check
          %p248 = pneg %p174
        $region30: #{deepfm_forward.1} parent=11 // pred_check_branch
          %250 = sbr.rel (%p248) target = $region32
        $region31: #{deepfm_forward.1} parent=11 // pred_region
          _
        $region32: #{deepfm_forward.1} parent=11 // pred_fallthru
          _
        // Predicated region
        $region33: #{deepfm_forward.1} parent=11 // pred_check
          %p251 = pneg %p195
        $region34: #{deepfm_forward.1} parent=11 // pred_check_branch
          %253 = sbr.rel (%p251) target = $region36
        $region35: #{deepfm_forward.1} parent=11 // pred_region
          _
        $region36: #{deepfm_forward.1} parent=11 // pred_fallthru
          _
      $region12: #{deepfm_forward.1} parent=5 // pred_fallthru
        _
      %p254 = scmp.lt.s32.totalorder %s17, 2
      // Predicated region
      $region37: #{deepfm_forward.1} parent=5 // pred_check
        %p255 = pneg %p254
      $region38: #{deepfm_forward.1} parent=5 // pred_check_branch
        %257 = sbr.rel (%p255) target = $region40
      $region39: #{deepfm_forward.1} parent=5 // pred_region
        // Predicated region
        $region41: #{deepfm_forward.1} parent=39 // pred_check
          %p258 = pneg %p37
        $region42: #{deepfm_forward.1} parent=39 // pred_check_branch
          %260 = sbr.rel (%p258) target = $region44
        $region43: #{deepfm_forward.1} parent=39 // pred_region
          %s261 = smul.u32 16, %s17
          %p262 = scmp.lt.s32.totalorder %s261, 31
          %s263 = scalar_select %p262, %s261, 31
          %s264 = smul.addr %s263, 4
          %s265 = scalar_lea.vmem %s0, %s264
          %s266 = smul.u32 16, %s17
        $region44: #{deepfm_forward.1} parent=39 // pred_fallthru
          _
        // Predicated region
        $region45: #{deepfm_forward.1} parent=39 // pred_check
          %p267 = pneg %p63
        $region46: #{deepfm_forward.1} parent=39 // pred_check_branch
          %269 = sbr.rel (%p267) target = $region48
        $region47: #{deepfm_forward.1} parent=39 // pred_region
          %s270 = smul.u32 16, %s17
          %p271 = scmp.lt.s32.totalorder %s270, 31
          %s272 = scalar_select %p271, %s270, 31
          %s273 = smul.addr %s272, 8
          %s274 = scalar_lea.vmem %s1, %s273
          %s275 = smul.u32 16, %s17
        $region48: #{deepfm_forward.1} parent=39 // pred_fallthru
          _
      $region40: #{deepfm_forward.1} parent=5 // pred_fallthru
        _
      %p276 = scmp.le.s32.totalorder 1, %s17
      %p277 = scmp.lt.s32.totalorder %s17, 3
      %p278 = pnand %p276, %p277
      %p279 = pneg %p278
      // Predicated region
      $region49: #{deepfm_forward.1} parent=5 // pred_check
        _
      $region50: #{deepfm_forward.1} parent=5 // pred_check_branch
        %281 = sbr.rel (%p278) target = $region52
      $region51: #{deepfm_forward.1} parent=5 // pred_region
        %s282 = ssub.s32 %s17, 1
        %s283 = smul.u32 16, %s22
        %p284 = scmp.lt.s32.totalorder %s283, 31
        %s285 = scalar_select %p284, %s283, 31
        %s286 = smul.addr %s285, 4
        %s287 = scalar_lea.vmem %s0, %s286
        %p288 = pneg %p43
        %p289 = pneg %p40
        %s290 = smul.u32 16, %s22
        %p291 = scmp.lt.s32.totalorder %s290, 31
        %s292 = scalar_select %p291, %s290, 31
        %s293 = smul.addr %s292, 8
        %s294 = scalar_lea.vmem %s1, %s293
        %p295 = pneg %p69
        %p296 = pneg %p66
        %p297 = pneg %p90
        %p298 = pneg %p87
        %p299 = pneg %p111
        %p300 = pneg %p108
        %p301 = pneg %p132
        %p302 = pneg %p129
        %p303 = pneg %p153
        %p304 = pneg %p150
        %p305 = pneg %p174
        %p306 = pneg %p171
        %p307 = pneg %p195
        %p308 = pneg %p192
        %p309 = pneg %p221
        %p310 = pneg %p218
        %s311 = sand.u32 %s208, 1
        %s312 = scalar_lea.sflag [#allocation3], %s311
        %s313 = sand.u32 %s208, 1
        %s314 = scalar_lea.vmem [#allocation2], %s313
        %s315 = smul.u32 16, %s22
        %p316 = scmp.lt.s32.totalorder %s315, 31
        %s317 = scalar_select %p316, %s315, 31
        %s318 = smul.addr %s317, 4
        %s319 = scalar_lea.vmem %s0, %s318
        %s320 = smul.u32 16, %s22
        %s321 = smul.u32 16, %s22
        %p322 = scmp.lt.s32.totalorder %s321, 31
        %s323 = scalar_select %p322, %s321, 31
        %s324 = smul.addr %s323, 8
        %s325 = scalar_lea.vmem %s1, %s324
        %s326 = smul.u32 16, %s22
        %v328 = vld [vmem:[%s319] sm:$0xf]
        %v329 = vld [vmem:[%s319 + $0x4] sm:$0xf]
        %v330 = vld [vmem:[%s319 + $0x8] sm:$0xf]
        %v331 = vld [vmem:[%s319 + $0xc] sm:$0xf]
        %v332 = vld [vmem:[%s319 + $0x10] sm:$0xf]
        %v333 = vld [vmem:[%s319 + $0x14] sm:$0xf]
        %v334 = vld [vmem:[%s319 + $0x18] sm:$0xf]
        %v335 = vld [vmem:[%s319 + $0x1c] sm:$0xf]
        %v336 = vld [vmem:[%s319 + $0x20] sm:$0xf]
        %v337 = vld [vmem:[%s319 + $0x24] sm:$0xf]
        %v338 = vld [vmem:[%s319 + $0x28] sm:$0xf]
        %v339 = vld [vmem:[%s319 + $0x2c] sm:$0xf]
        %v340 = vld [vmem:[%s319 + $0x30] sm:$0xf]
        %v341 = vld [vmem:[%s319 + $0x34] sm:$0xf]
        %v342 = vld [vmem:[%s319 + $0x38] sm:$0xf]
        %v343 = vld [vmem:[%s319 + $0x3c] sm:$0xf]
        %v344 = vld [vmem:[%s325] sm:$0xff]
        %v345 = vld [vmem:[%s325 + $0x8] sm:$0xff]
        %v346 = vld [vmem:[%s325 + $0x10] sm:$0xff]
        %v347 = vld [vmem:[%s325 + $0x18] sm:$0xff]
        %v348 = vld [vmem:[%s325 + $0x20] sm:$0xff]
        %v349 = vld [vmem:[%s325 + $0x28] sm:$0xff]
        %v350 = vld [vmem:[%s325 + $0x30] sm:$0xff]
        %v351 = vld [vmem:[%s325 + $0x38] sm:$0xff]
        %v352 = vld [vmem:[%s325 + $0x40] sm:$0xff]
        %v353 = vld [vmem:[%s325 + $0x48] sm:$0xff]
        %v354 = vld [vmem:[%s325 + $0x50] sm:$0xff]
        %v355 = vld [vmem:[%s325 + $0x58] sm:$0xff]
        %v356 = vld [vmem:[%s325 + $0x60] sm:$0xff]
        %v357 = vld [vmem:[%s325 + $0x68] sm:$0xff]
        %v358 = vld [vmem:[%s325 + $0x70] sm:$0xff]
        %v359 = vld [vmem:[%s325 + $0x78] sm:$0xff]
        %v360 = vld [vmem:[%s2] sm:$0xff]
        %vm361 = vcmask 64512
        %v363 = vsel %vm361, %v344, 0
        %v366 = vsel %vm361, %v345, 0
        %v369 = vsel %vm361, %v346, 0
        %v372 = vsel %vm361, %v347, 0
        %v375 = vsel %vm361, %v348, 0
        %v378 = vsel %vm361, %v349, 0
        %v381 = vsel %vm361, %v350, 0
        %v384 = vsel %vm361, %v351, 0
        %v387 = vsel %vm361, %v352, 0
        %v390 = vsel %vm361, %v353, 0
        %v393 = vsel %vm361, %v354, 0
        %v396 = vsel %vm361, %v355, 0
        %v399 = vsel %vm361, %v356, 0
        %v402 = vsel %vm361, %v357, 0
        %v405 = vsel %vm361, %v358, 0
        %v408 = vsel %vm361, %v359, 0
        %410 = vmatpush.msra.mxu0 0.0
        %411 = vmatpush.msra.mxu0 0.0
        %412 = vmatpush.msra.mxu0 0.0
        %413 = vmatpush.msra.mxu0 0.0
        %414 = vmatpush.msra.mxu0 0.0
        %415 = vmatpush.msra.mxu0 0.0
        %416 = vmatpush.msra.mxu0 0.0
        %417 = vmatpush.msra.mxu0 0.0
        %418 = vmatpush.msra.mxu0 0.0
        %419 = vmatpush.msra.mxu0 0.0
        %420 = vmatpush.msra.mxu0 0.0
        %421 = vmatpush.msra.mxu0 0.0
        %422 = vmatpush.msra.mxu0 0.0
        %423 = vmatpush.msra.mxu0 0.0
        %424 = vmatpush.msra.mxu0 0.0
        %425 = vmatpush.msra.mxu0 %v360
        %426 = vmatmul.f32.gmra.mxu0 %v363
        %v427 = vpop.f32.mrf.mxu0
        %v428 = vadd.f32 0.0, %v427
        %429 = vmatmul.f32.gmra.mxu0 %v366
        %v430 = vpop.f32.mrf.mxu0
        %v431 = vadd.f32 0.0, %v430
        %432 = vmatmul.f32.gmra.mxu0 %v369
        %v433 = vpop.f32.mrf.mxu0
        %v434 = vadd.f32 0.0, %v433
        %435 = vmatmul.f32.gmra.mxu0 %v372
        %v436 = vpop.f32.mrf.mxu0
        %v437 = vadd.f32 0.0, %v436
        %438 = vmatmul.f32.gmra.mxu0 %v375
        %v439 = vpop.f32.mrf.mxu0
        %v440 = vadd.f32 0.0, %v439
        %441 = vmatmul.f32.gmra.mxu0 %v378
        %v442 = vpop.f32.mrf.mxu0
        %v443 = vadd.f32 0.0, %v442
        %444 = vmatmul.f32.gmra.mxu0 %v381
        %v445 = vpop.f32.mrf.mxu0
        %v446 = vadd.f32 0.0, %v445
        %447 = vmatmul.f32.gmra.mxu0 %v384
        %v448 = vpop.f32.mrf.mxu0
        %v449 = vadd.f32 0.0, %v448
        %450 = vmatmul.f32.gmra.mxu0 %v387
        %v451 = vpop.f32.mrf.mxu0
        %v452 = vadd.f32 0.0, %v451
        %453 = vmatmul.f32.gmra.mxu0 %v390
        %v454 = vpop.f32.mrf.mxu0
        %v455 = vadd.f32 0.0, %v454
        %456 = vmatmul.f32.gmra.mxu0 %v393
        %v457 = vpop.f32.mrf.mxu0
        %v458 = vadd.f32 0.0, %v457
        %459 = vmatmul.f32.gmra.mxu0 %v396
        %v460 = vpop.f32.mrf.mxu0
        %v461 = vadd.f32 0.0, %v460
        %462 = vmatmul.f32.gmra.mxu0 %v399
        %v463 = vpop.f32.mrf.mxu0
        %v464 = vadd.f32 0.0, %v463
        %465 = vmatmul.f32.gmra.mxu0 %v402
        %v466 = vpop.f32.mrf.mxu0
        %v467 = vadd.f32 0.0, %v466
        %468 = vmatmul.f32.gmra.mxu0 %v405
        %v469 = vpop.f32.mrf.mxu0
        %v470 = vadd.f32 0.0, %v469
        %471 = vmatmul.f32.gmra.mxu0 %v408
        %v472 = vpop.f32.mrf.mxu0
        %v473 = vadd.f32 0.0, %v472
        %474 = vdwg.mxu0
        %v475 = vld [vmem:[%s3] sm:$0xff]
        %v476 = vld [vmem:[%s3 + $0x8] sm:$0xff]
        %v477 = vld [vmem:[%s3 + $0x10] sm:$0xff]
        %v478 = vld [vmem:[%s3 + $0x18] sm:$0xff]
        %v479 = vld [vmem:[%s3 + $0x20] sm:$0xff]
        %v496 = vunpack.c.l.b16 %v328
        %v497 = vunpack.c.l.b16 %v329
        %v498 = vunpack.c.l.b16 %v330
        %v499 = vunpack.c.l.b16 %v331
        %v500 = vunpack.c.l.b16 %v332
        %v501 = vunpack.c.l.b16 %v333
        %v502 = vunpack.c.l.b16 %v334
        %v503 = vunpack.c.l.b16 %v335
        %v504 = vunpack.c.l.b16 %v336
        %v505 = vunpack.c.l.b16 %v337
        %v506 = vunpack.c.l.b16 %v338
        %v507 = vunpack.c.l.b16 %v339
        %v508 = vunpack.c.l.b16 %v340
        %v509 = vunpack.c.l.b16 %v341
        %v510 = vunpack.c.l.b16 %v342
        %v511 = vunpack.c.l.b16 %v343
        %v512 = vpack.c.b16 %v497, %v496
        %v513 = vpack.c.b16 %v499, %v498
        %v514 = vpack.c.b16 %v501, %v500
        %v515 = vpack.c.b16 %v503, %v502
        %v516 = vpack.c.b16 %v505, %v504
        %v517 = vpack.c.b16 %v507, %v506
        %v518 = vpack.c.b16 %v509, %v508
        %v519 = vpack.c.b16 %v511, %v510
        %v525 = vunpack.c.l.b16 %v475
        %v526 = vunpack.c.h.b16 %v475
        %v527 = vunpack.c.l.b16 %v476
        %v528 = vunpack.c.h.b16 %v476
        %v529 = vunpack.c.l.b16 %v477
        %v530 = vunpack.c.h.b16 %v477
        %v531 = vunpack.c.l.b16 %v478
        %v532 = vunpack.c.h.b16 %v478
        %v533 = vunpack.c.l.b16 %v479
        %v534 = vunpack.c.h.b16 %v479
        %v535 = vpack.c.b16 %v527, %v525
        %v536 = vpack.c.b16 %v528, %v526
        %v537 = vpack.c.b16 %v531, %v529
        %v538 = vpack.c.b16 %v532, %v530
        %v539 = vpack.c.b16 %v533, %v533
        %v540 = vpack.c.b16 %v534, %v534
        %vm545 = vcmask 326656
        %v547 = vsel %vm545, %v512, 0
        %v550 = vsel %vm545, %v513, 0
        %v553 = vsel %vm545, %v514, 0
        %v556 = vsel %vm545, %v515, 0
        %v559 = vsel %vm545, %v516, 0
        %v562 = vsel %vm545, %v517, 0
        %v565 = vsel %vm545, %v518, 0
        %v568 = vsel %vm545, %v519, 0
        %vm570 = vcmask 1043456
        %v572 = vsel %vm570, %v539, 0
        %v575 = vsel %vm570, %v540, 0
        %577 = vmatpush.bf16.msra.mxu0 0
        %578 = vmatpush.bf16.msra.mxu0 0
        %579 = vmatpush.bf16.msra.mxu0 0
        %580 = vmatpush.bf16.msra.mxu0 0
        %581 = vmatpush.bf16.msra.mxu0 0
        %582 = vmatpush.bf16.msra.mxu0 %v572
        %583 = vmatpush.bf16.msra.mxu0 %v537
        %584 = vmatpush.bf16.msra.mxu0 %v535
        %585 = vmatmul.bf16.gmra.mxu0 %v547
        %v586 = vpop.f32.mrf.mxu0
        %v587 = vadd.f32 0.0, %v586
        %v588 = vpop.f32.mrf.mxu0
        %v589 = vadd.f32 0.0, %v588
        %590 = vmatmul.bf16.gmra.mxu0 %v550
        %v591 = vpop.f32.mrf.mxu0
        %v592 = vadd.f32 0.0, %v591
        %v593 = vpop.f32.mrf.mxu0
        %v594 = vadd.f32 0.0, %v593
        %595 = vmatmul.bf16.gmra.mxu0 %v553
        %v596 = vpop.f32.mrf.mxu0
        %v597 = vadd.f32 0.0, %v596
        %v598 = vpop.f32.mrf.mxu0
        %v599 = vadd.f32 0.0, %v598
        %600 = vmatmul.bf16.gmra.mxu0 %v556
        %v601 = vpop.f32.mrf.mxu0
        %v602 = vadd.f32 0.0, %v601
        %v603 = vpop.f32.mrf.mxu0
        %v604 = vadd.f32 0.0, %v603
        %605 = vmatmul.bf16.gmra.mxu0 %v559
        %v606 = vpop.f32.mrf.mxu0
        %v607 = vadd.f32 0.0, %v606
        %v608 = vpop.f32.mrf.mxu0
        %v609 = vadd.f32 0.0, %v608
        %610 = vmatmul.bf16.gmra.mxu0 %v562
        %v611 = vpop.f32.mrf.mxu0
        %v612 = vadd.f32 0.0, %v611
        %v613 = vpop.f32.mrf.mxu0
        %v614 = vadd.f32 0.0, %v613
        %615 = vmatmul.bf16.gmra.mxu0 %v565
        %v616 = vpop.f32.mrf.mxu0
        %v617 = vadd.f32 0.0, %v616
        %v618 = vpop.f32.mrf.mxu0
        %v619 = vadd.f32 0.0, %v618
        %620 = vmatmul.bf16.gmra.mxu0 %v568
        %v621 = vpop.f32.mrf.mxu0
        %v622 = vadd.f32 0.0, %v621
        %v623 = vpop.f32.mrf.mxu0
        %v624 = vadd.f32 0.0, %v623
        %625 = vdwg.mxu0
        %626 = vmatpush.bf16.msra.mxu0 0
        %627 = vmatpush.bf16.msra.mxu0 0
        %628 = vmatpush.bf16.msra.mxu0 0
        %629 = vmatpush.bf16.msra.mxu0 0
        %630 = vmatpush.bf16.msra.mxu0 0
        %631 = vmatpush.bf16.msra.mxu0 %v575
        %632 = vmatpush.bf16.msra.mxu0 %v538
        %633 = vmatpush.bf16.msra.mxu0 %v536
        %634 = vmatmul.bf16.gmra.mxu0 %v547
        %v635 = vpop.f32.mrf.mxu0
        %v636 = vadd.f32 0.0, %v635
        %v637 = vpop.f32.mrf.mxu0
        %v638 = vadd.f32 0.0, %v637
        %639 = vmatmul.bf16.gmra.mxu0 %v550
        %v640 = vpop.f32.mrf.mxu0
        %v641 = vadd.f32 0.0, %v640
        %v642 = vpop.f32.mrf.mxu0
        %v643 = vadd.f32 0.0, %v642
        %644 = vmatmul.bf16.gmra.mxu0 %v553
        %v645 = vpop.f32.mrf.mxu0
        %v646 = vadd.f32 0.0, %v645
        %v647 = vpop.f32.mrf.mxu0
        %v648 = vadd.f32 0.0, %v647
        %649 = vmatmul.bf16.gmra.mxu0 %v556
        %v650 = vpop.f32.mrf.mxu0
        %v651 = vadd.f32 0.0, %v650
        %v652 = vpop.f32.mrf.mxu0
        %v653 = vadd.f32 0.0, %v652
        %654 = vmatmul.bf16.gmra.mxu0 %v559
        %v655 = vpop.f32.mrf.mxu0
        %v656 = vadd.f32 0.0, %v655
        %v657 = vpop.f32.mrf.mxu0
        %v658 = vadd.f32 0.0, %v657
        %659 = vmatmul.bf16.gmra.mxu0 %v562
        %v660 = vpop.f32.mrf.mxu0
        %v661 = vadd.f32 0.0, %v660
        %v662 = vpop.f32.mrf.mxu0
        %v663 = vadd.f32 0.0, %v662
        %664 = vmatmul.bf16.gmra.mxu0 %v565
        %v665 = vpop.f32.mrf.mxu0
        %v666 = vadd.f32 0.0, %v665
        %v667 = vpop.f32.mrf.mxu0
        %v668 = vadd.f32 0.0, %v667
        %669 = vmatmul.bf16.gmra.mxu0 %v568
        %v670 = vpop.f32.mrf.mxu0
        %v671 = vadd.f32 0.0, %v670
        %v672 = vpop.f32.mrf.mxu0
        %v673 = vadd.f32 0.0, %v672
        %674 = vdwg.mxu0
        %v675 = vadd.f32 %v636, %v428
        %v676 = vadd.f32 %v638, %v431
        %v677 = vadd.f32 %v641, %v434
        %v678 = vadd.f32 %v643, %v437
        %v679 = vadd.f32 %v646, %v440
        %v680 = vadd.f32 %v648, %v443
        %v681 = vadd.f32 %v651, %v446
        %v682 = vadd.f32 %v653, %v449
        %v683 = vadd.f32 %v656, %v452
        %v684 = vadd.f32 %v658, %v455
        %v685 = vadd.f32 %v661, %v458
        %v686 = vadd.f32 %v663, %v461
        %v687 = vadd.f32 %v666, %v464
        %v688 = vadd.f32 %v668, %v467
        %v689 = vadd.f32 %v671, %v470
        %v690 = vadd.f32 %v673, %v473
        %v691 = vunpack.c.l.bf16 %v328
        %v692 = vunpack.c.l.bf16 %v329
        %v693 = vunpack.c.l.bf16 %v330
        %v694 = vunpack.c.l.bf16 %v331
        %v695 = vunpack.c.l.bf16 %v332
        %v696 = vunpack.c.l.bf16 %v333
        %v697 = vunpack.c.l.bf16 %v334
        %v698 = vunpack.c.l.bf16 %v335
        %v699 = vunpack.c.l.bf16 %v336
        %v700 = vunpack.c.l.bf16 %v337
        %v701 = vunpack.c.l.bf16 %v338
        %v702 = vunpack.c.l.bf16 %v339
        %v703 = vunpack.c.l.bf16 %v340
        %v704 = vunpack.c.l.bf16 %v341
        %v705 = vunpack.c.l.bf16 %v342
        %v706 = vunpack.c.l.bf16 %v343
        %v707 = vmul.f32 %v691, %v691
        %v708 = vmul.f32 %v692, %v692
        %v709 = vmul.f32 %v693, %v693
        %v710 = vmul.f32 %v694, %v694
        %v711 = vmul.f32 %v695, %v695
        %v712 = vmul.f32 %v696, %v696
        %v713 = vmul.f32 %v697, %v697
        %v714 = vmul.f32 %v698, %v698
        %v715 = vmul.f32 %v699, %v699
        %v716 = vmul.f32 %v700, %v700
        %v717 = vmul.f32 %v701, %v701
        %v718 = vmul.f32 %v702, %v702
        %v719 = vmul.f32 %v703, %v703
        %v720 = vmul.f32 %v704, %v704
        %v721 = vmul.f32 %v705, %v705
        %v722 = vmul.f32 %v706, %v706
        %v723 = vsel %vm545, %v707, 0.0
        %724 = vadd.xlane.f32.xlu0 %v723
        %v725 = vpop.xlane.xlu0 %724
        %v726 = vsel %vm545, %v708, 0.0
        %727 = vadd.xlane.f32.xlu0 %v726
        %v728 = vpop.xlane.xlu0 %727
        %v729 = vsel %vm545, %v709, 0.0
        %730 = vadd.xlane.f32.xlu0 %v729
        %v731 = vpop.xlane.xlu0 %730
        %v732 = vsel %vm545, %v710, 0.0
        %733 = vadd.xlane.f32.xlu0 %v732
        %v734 = vpop.xlane.xlu0 %733
        %v735 = vsel %vm545, %v711, 0.0
        %736 = vadd.xlane.f32.xlu0 %v735
        %v737 = vpop.xlane.xlu0 %736
        %v738 = vsel %vm545, %v712, 0.0
        %739 = vadd.xlane.f32.xlu0 %v738
        %v740 = vpop.xlane.xlu0 %739
        %v741 = vsel %vm545, %v713, 0.0
        %742 = vadd.xlane.f32.xlu0 %v741
        %v743 = vpop.xlane.xlu0 %742
        %v744 = vsel %vm545, %v714, 0.0
        %745 = vadd.xlane.f32.xlu0 %v744
        %v746 = vpop.xlane.xlu0 %745
        %v747 = vsel %vm545, %v715, 0.0
        %748 = vadd.xlane.f32.xlu0 %v747
        %v749 = vpop.xlane.xlu0 %748
        %v750 = vsel %vm545, %v716, 0.0
        %751 = vadd.xlane.f32.xlu0 %v750
        %v752 = vpop.xlane.xlu0 %751
        %v753 = vsel %vm545, %v717, 0.0
        %754 = vadd.xlane.f32.xlu0 %v753
        %v755 = vpop.xlane.xlu0 %754
        %v756 = vsel %vm545, %v718, 0.0
        %757 = vadd.xlane.f32.xlu0 %v756
        %v758 = vpop.xlane.xlu0 %757
        %v759 = vsel %vm545, %v719, 0.0
        %760 = vadd.xlane.f32.xlu0 %v759
        %v761 = vpop.xlane.xlu0 %760
        %v762 = vsel %vm545, %v720, 0.0
        %763 = vadd.xlane.f32.xlu0 %v762
        %v764 = vpop.xlane.xlu0 %763
        %v765 = vsel %vm545, %v721, 0.0
        %766 = vadd.xlane.f32.xlu0 %v765
        %v767 = vpop.xlane.xlu0 %766
        %v768 = vsel %vm545, %v722, 0.0
        %769 = vadd.xlane.f32.xlu0 %v768
        %v770 = vpop.xlane.xlu0 %769
        %v771 = vmul.f32 %v428, %v428
        %v772 = vmul.f32 %v431, %v431
        %v773 = vmul.f32 %v434, %v434
        %v774 = vmul.f32 %v437, %v437
        %v775 = vmul.f32 %v440, %v440
        %v776 = vmul.f32 %v443, %v443
        %v777 = vmul.f32 %v446, %v446
        %v778 = vmul.f32 %v449, %v449
        %v779 = vmul.f32 %v452, %v452
        %v780 = vmul.f32 %v455, %v455
        %v781 = vmul.f32 %v458, %v458
        %v782 = vmul.f32 %v461, %v461
        %v783 = vmul.f32 %v464, %v464
        %v784 = vmul.f32 %v467, %v467
        %v785 = vmul.f32 %v470, %v470
        %v786 = vmul.f32 %v473, %v473
        %vm787 = vcmask 80896
        %v788 = vsel %vm787, %v771, 0.0
        %789 = vadd.xlane.f32.xlu0 %v788
        %v790 = vpop.xlane.xlu0 %789
        %v791 = vsel %vm787, %v772, 0.0
        %792 = vadd.xlane.f32.xlu0 %v791
        %v793 = vpop.xlane.xlu0 %792
        %v794 = vsel %vm787, %v773, 0.0
        %795 = vadd.xlane.f32.xlu0 %v794
        %v796 = vpop.xlane.xlu0 %795
        %v797 = vsel %vm787, %v774, 0.0
        %798 = vadd.xlane.f32.xlu0 %v797
        %v799 = vpop.xlane.xlu0 %798
        %v800 = vsel %vm787, %v775, 0.0
        %801 = vadd.xlane.f32.xlu0 %v800
        %v802 = vpop.xlane.xlu0 %801
        %v803 = vsel %vm787, %v776, 0.0
        %804 = vadd.xlane.f32.xlu0 %v803
        %v805 = vpop.xlane.xlu0 %804
        %v806 = vsel %vm787, %v777, 0.0
        %807 = vadd.xlane.f32.xlu0 %v806
        %v808 = vpop.xlane.xlu0 %807
        %v809 = vsel %vm787, %v778, 0.0
        %810 = vadd.xlane.f32.xlu0 %v809
        %v811 = vpop.xlane.xlu0 %810
        %v812 = vsel %vm787, %v779, 0.0
        %813 = vadd.xlane.f32.xlu0 %v812
        %v814 = vpop.xlane.xlu0 %813
        %v815 = vsel %vm787, %v780, 0.0
        %816 = vadd.xlane.f32.xlu0 %v815
        %v817 = vpop.xlane.xlu0 %816
        %v818 = vsel %vm787, %v781, 0.0
        %819 = vadd.xlane.f32.xlu0 %v818
        %v820 = vpop.xlane.xlu0 %819
        %v821 = vsel %vm787, %v782, 0.0
        %822 = vadd.xlane.f32.xlu0 %v821
        %v823 = vpop.xlane.xlu0 %822
        %v824 = vsel %vm787, %v783, 0.0
        %825 = vadd.xlane.f32.xlu0 %v824
        %v826 = vpop.xlane.xlu0 %825
        %v827 = vsel %vm787, %v784, 0.0
        %828 = vadd.xlane.f32.xlu0 %v827
        %v829 = vpop.xlane.xlu0 %828
        %v830 = vsel %vm787, %v785, 0.0
        %831 = vadd.xlane.f32.xlu0 %v830
        %v832 = vpop.xlane.xlu0 %831
        %v833 = vsel %vm787, %v786, 0.0
        %834 = vadd.xlane.f32.xlu0 %v833
        %v835 = vpop.xlane.xlu0 %834
        %v836 = vadd.f32 %v725, %v790
        %v837 = vadd.f32 %v728, %v793
        %v838 = vadd.f32 %v731, %v796
        %v839 = vadd.f32 %v734, %v799
        %v840 = vadd.f32 %v737, %v802
        %v841 = vadd.f32 %v740, %v805
        %v842 = vadd.f32 %v743, %v808
        %v843 = vadd.f32 %v746, %v811
        %v844 = vadd.f32 %v749, %v814
        %v845 = vadd.f32 %v752, %v817
        %v846 = vadd.f32 %v755, %v820
        %v847 = vadd.f32 %v758, %v823
        %v848 = vadd.f32 %v761, %v826
        %v849 = vadd.f32 %v764, %v829
        %v850 = vadd.f32 %v767, %v832
        %v851 = vadd.f32 %v770, %v835
        %v852 = vmul.f32 %v675, %v675
        %v853 = vmul.f32 %v676, %v676
        %v854 = vmul.f32 %v677, %v677
        %v855 = vmul.f32 %v678, %v678
        %v856 = vmul.f32 %v679, %v679
        %v857 = vmul.f32 %v680, %v680
        %v858 = vmul.f32 %v681, %v681
        %v859 = vmul.f32 %v682, %v682
        %v860 = vmul.f32 %v683, %v683
        %v861 = vmul.f32 %v684, %v684
        %v862 = vmul.f32 %v685, %v685
        %v863 = vmul.f32 %v686, %v686
        %v864 = vmul.f32 %v687, %v687
        %v865 = vmul.f32 %v688, %v688
        %v866 = vmul.f32 %v689, %v689
        %v867 = vmul.f32 %v690, %v690
        %v868 = vsel %vm787, %v852, 0.0
        %869 = vadd.xlane.f32.xlu0 %v868
        %v870 = vpop.xlane.xlu0 %869
        %v871 = vsel %vm787, %v853, 0.0
        %872 = vadd.xlane.f32.xlu0 %v871
        %v873 = vpop.xlane.xlu0 %872
        %v874 = vsel %vm787, %v854, 0.0
        %875 = vadd.xlane.f32.xlu0 %v874
        %v876 = vpop.xlane.xlu0 %875
        %v877 = vsel %vm787, %v855, 0.0
        %878 = vadd.xlane.f32.xlu0 %v877
        %v879 = vpop.xlane.xlu0 %878
        %v880 = vsel %vm787, %v856, 0.0
        %881 = vadd.xlane.f32.xlu0 %v880
        %v882 = vpop.xlane.xlu0 %881
        %v883 = vsel %vm787, %v857, 0.0
        %884 = vadd.xlane.f32.xlu0 %v883
        %v885 = vpop.xlane.xlu0 %884
        %v886 = vsel %vm787, %v858, 0.0
        %887 = vadd.xlane.f32.xlu0 %v886
        %v888 = vpop.xlane.xlu0 %887
        %v889 = vsel %vm787, %v859, 0.0
        %890 = vadd.xlane.f32.xlu0 %v889
        %v891 = vpop.xlane.xlu0 %890
        %v892 = vsel %vm787, %v860, 0.0
        %893 = vadd.xlane.f32.xlu0 %v892
        %v894 = vpop.xlane.xlu0 %893
        %v895 = vsel %vm787, %v861, 0.0
        %896 = vadd.xlane.f32.xlu0 %v895
        %v897 = vpop.xlane.xlu0 %896
        %v898 = vsel %vm787, %v862, 0.0
        %899 = vadd.xlane.f32.xlu0 %v898
        %v900 = vpop.xlane.xlu0 %899
        %v901 = vsel %vm787, %v863, 0.0
        %902 = vadd.xlane.f32.xlu0 %v901
        %v903 = vpop.xlane.xlu0 %902
        %v904 = vsel %vm787, %v864, 0.0
        %905 = vadd.xlane.f32.xlu0 %v904
        %v906 = vpop.xlane.xlu0 %905
        %v907 = vsel %vm787, %v865, 0.0
        %908 = vadd.xlane.f32.xlu0 %v907
        %v909 = vpop.xlane.xlu0 %908
        %v910 = vsel %vm787, %v866, 0.0
        %911 = vadd.xlane.f32.xlu0 %v910
        %v912 = vpop.xlane.xlu0 %911
        %v913 = vsel %vm787, %v867, 0.0
        %914 = vadd.xlane.f32.xlu0 %v913
        %v915 = vpop.xlane.xlu0 %914
        %v916 = vsub.f32 %v870, %v836
        %v917 = vsub.f32 %v873, %v837
        %v918 = vsub.f32 %v876, %v838
        %v919 = vsub.f32 %v879, %v839
        %v920 = vsub.f32 %v882, %v840
        %v921 = vsub.f32 %v885, %v841
        %v922 = vsub.f32 %v888, %v842
        %v923 = vsub.f32 %v891, %v843
        %v924 = vsub.f32 %v894, %v844
        %v925 = vsub.f32 %v897, %v845
        %v926 = vsub.f32 %v900, %v846
        %v927 = vsub.f32 %v903, %v847
        %v928 = vsub.f32 %v906, %v848
        %v929 = vsub.f32 %v909, %v849
        %v930 = vsub.f32 %v912, %v850
        %v931 = vsub.f32 %v915, %v851
        %v932 = vmul.f32 %v916, 0.5
        %v933 = vmul.f32 %v917, 0.5
        %v934 = vmul.f32 %v918, 0.5
        %v935 = vmul.f32 %v919, 0.5
        %v936 = vmul.f32 %v920, 0.5
        %v937 = vmul.f32 %v921, 0.5
        %v938 = vmul.f32 %v922, 0.5
        %v939 = vmul.f32 %v923, 0.5
        %v940 = vmul.f32 %v924, 0.5
        %v941 = vmul.f32 %v925, 0.5
        %v942 = vmul.f32 %v926, 0.5
        %v943 = vmul.f32 %v927, 0.5
        %v944 = vmul.f32 %v928, 0.5
        %v945 = vmul.f32 %v929, 0.5
        %v946 = vmul.f32 %v930, 0.5
        %v947 = vmul.f32 %v931, 0.5
        %v948 = vld [vmem:[%s6] sm:$0x7]
        %v949 = vpack.c.bf16 %v431, %v428
        %v950 = vpack.c.bf16 %v437, %v434
        %v951 = vpack.c.bf16 %v443, %v440
        %v952 = vpack.c.bf16 %v449, %v446
        %v953 = vpack.c.bf16 %v455, %v452
        %v954 = vpack.c.bf16 %v461, %v458
        %v955 = vpack.c.bf16 %v467, %v464
        %v956 = vpack.c.bf16 %v473, %v470
        %v957 = vld [vmem:[%s4] sm:$0xf]
        %v958 = vld [vmem:[%s4 + $0x4] sm:$0x1]
        %v961 = vunpack.c.l.b16 %v957
        %v962 = vunpack.c.l.b16 %v958
        %v963 = vpack.c.b16 %v962, %v961
        %v965 = vsel %vm787, %v949, 0
        %v968 = vsel %vm787, %v950, 0
        %v971 = vsel %vm787, %v951, 0
        %v974 = vsel %vm787, %v952, 0
        %v977 = vsel %vm787, %v953, 0
        %v980 = vsel %vm787, %v954, 0
        %v983 = vsel %vm787, %v955, 0
        %v986 = vsel %vm787, %v956, 0
        %vm988 = vcmask 1044480
        %v990 = vsel %vm988, %v963, 0
        %992 = vmatpush.bf16.msra.mxu0 0
        %993 = vmatpush.bf16.msra.mxu0 0
        %994 = vmatpush.bf16.msra.mxu0 0
        %995 = vmatpush.bf16.msra.mxu0 0
        %996 = vmatpush.bf16.msra.mxu0 0
        %997 = vmatpush.bf16.msra.mxu0 0
        %998 = vmatpush.bf16.msra.mxu0 0
        %999 = vmatpush.bf16.msra.mxu0 %v990
        %1000 = vmatmul.bf16.gmra.mxu0 %v965
        %v1001 = vpop.f32.mrf.mxu0
        %v1002 = vadd.f32 0.0, %v1001
        %v1003 = vpop.f32.mrf.mxu0
        %v1004 = vadd.f32 0.0, %v1003
        %1005 = vmatmul.bf16.gmra.mxu0 %v968
        %v1006 = vpop.f32.mrf.mxu0
        %v1007 = vadd.f32 0.0, %v1006
        %v1008 = vpop.f32.mrf.mxu0
        %v1009 = vadd.f32 0.0, %v1008
        %1010 = vmatmul.bf16.gmra.mxu0 %v971
        %v1011 = vpop.f32.mrf.mxu0
        %v1012 = vadd.f32 0.0, %v1011
        %v1013 = vpop.f32.mrf.mxu0
        %v1014 = vadd.f32 0.0, %v1013
        %1015 = vmatmul.bf16.gmra.mxu0 %v974
        %v1016 = vpop.f32.mrf.mxu0
        %v1017 = vadd.f32 0.0, %v1016
        %v1018 = vpop.f32.mrf.mxu0
        %v1019 = vadd.f32 0.0, %v1018
        %1020 = vmatmul.bf16.gmra.mxu0 %v977
        %v1021 = vpop.f32.mrf.mxu0
        %v1022 = vadd.f32 0.0, %v1021
        %v1023 = vpop.f32.mrf.mxu0
        %v1024 = vadd.f32 0.0, %v1023
        %1025 = vmatmul.bf16.gmra.mxu0 %v980
        %v1026 = vpop.f32.mrf.mxu0
        %v1027 = vadd.f32 0.0, %v1026
        %v1028 = vpop.f32.mrf.mxu0
        %v1029 = vadd.f32 0.0, %v1028
        %1030 = vmatmul.bf16.gmra.mxu0 %v983
        %v1031 = vpop.f32.mrf.mxu0
        %v1032 = vadd.f32 0.0, %v1031
        %v1033 = vpop.f32.mrf.mxu0
        %v1034 = vadd.f32 0.0, %v1033
        %1035 = vmatmul.bf16.gmra.mxu0 %v986
        %v1036 = vpop.f32.mrf.mxu0
        %v1037 = vadd.f32 0.0, %v1036
        %v1038 = vpop.f32.mrf.mxu0
        %v1039 = vadd.f32 0.0, %v1038
        %1040 = vdwg.mxu0
        %v1041 = vadd.f32 %v587, %v1002
        %v1042 = vadd.f32 %v589, %v1004
        %v1043 = vadd.f32 %v592, %v1007
        %v1044 = vadd.f32 %v594, %v1009
        %v1045 = vadd.f32 %v597, %v1012
        %v1046 = vadd.f32 %v599, %v1014
        %v1047 = vadd.f32 %v602, %v1017
        %v1048 = vadd.f32 %v604, %v1019
        %v1049 = vadd.f32 %v607, %v1022
        %v1050 = vadd.f32 %v609, %v1024
        %v1051 = vadd.f32 %v612, %v1027
        %v1052 = vadd.f32 %v614, %v1029
        %v1053 = vadd.f32 %v617, %v1032
        %v1054 = vadd.f32 %v619, %v1034
        %v1055 = vadd.f32 %v622, %v1037
        %v1056 = vadd.f32 %v624, %v1039
        %v1057 = vperm.slane %v948, 0
        %v1058 = vadd.f32 %v1041, %v1057
        %v1059 = vadd.f32 %v1042, %v1057
        %v1060 = vadd.f32 %v1043, %v1057
        %v1061 = vadd.f32 %v1044, %v1057
        %v1062 = vadd.f32 %v1045, %v1057
        %v1063 = vadd.f32 %v1046, %v1057
        %v1064 = vadd.f32 %v1047, %v1057
        %v1065 = vadd.f32 %v1048, %v1057
        %v1066 = vadd.f32 %v1049, %v1057
        %v1067 = vadd.f32 %v1050, %v1057
        %v1068 = vadd.f32 %v1051, %v1057
        %v1069 = vadd.f32 %v1052, %v1057
        %v1070 = vadd.f32 %v1053, %v1057
        %v1071 = vadd.f32 %v1054, %v1057
        %v1072 = vadd.f32 %v1055, %v1057
        %v1073 = vadd.f32 %v1056, %v1057
        %v1074 = vmax.f32 %v1058, 0.0
        %v1075 = vmax.f32 %v1059, 0.0
        %v1076 = vmax.f32 %v1060, 0.0
        %v1077 = vmax.f32 %v1061, 0.0
        %v1078 = vmax.f32 %v1062, 0.0
        %v1079 = vmax.f32 %v1063, 0.0
        %v1080 = vmax.f32 %v1064, 0.0
        %v1081 = vmax.f32 %v1065, 0.0
        %v1082 = vmax.f32 %v1066, 0.0
        %v1083 = vmax.f32 %v1067, 0.0
        %v1084 = vmax.f32 %v1068, 0.0
        %v1085 = vmax.f32 %v1069, 0.0
        %v1086 = vmax.f32 %v1070, 0.0
        %v1087 = vmax.f32 %v1071, 0.0
        %v1088 = vmax.f32 %v1072, 0.0
        %v1089 = vmax.f32 %v1073, 0.0
        %v1090 = vpack.c.bf16 %v1075, %v1074
        %v1091 = vpack.c.bf16 %v1077, %v1076
        %v1092 = vpack.c.bf16 %v1079, %v1078
        %v1093 = vpack.c.bf16 %v1081, %v1080
        %v1094 = vpack.c.bf16 %v1083, %v1082
        %v1095 = vpack.c.bf16 %v1085, %v1084
        %v1096 = vpack.c.bf16 %v1087, %v1086
        %v1097 = vpack.c.bf16 %v1089, %v1088
        %v1098 = vld [vmem:[%s5] sm:$0xf]
        %v1099 = vld [vmem:[%s5 + $0x4] sm:$0xf]
        %v1100 = vld [vmem:[%s5 + $0x8] sm:$0xf]
        %v1101 = vld [vmem:[%s5 + $0xc] sm:$0xf]
        %v1102 = vld [vmem:[%s5 + $0x10] sm:$0xf]
        %v1103 = vld [vmem:[%s5 + $0x14] sm:$0xf]
        %v1104 = vld [vmem:[%s5 + $0x18] sm:$0xf]
        %v1105 = vld [vmem:[%s5 + $0x1c] sm:$0xf]
        %v1106 = vld [vmem:[%s5 + $0x20] sm:$0xf]
        %v1107 = vld [vmem:[%s5 + $0x24] sm:$0xf]
        %v1108 = vld [vmem:[%s5 + $0x28] sm:$0xf]
        %v1109 = vld [vmem:[%s5 + $0x2c] sm:$0xf]
        %v1110 = vld [vmem:[%s5 + $0x30] sm:$0xf]
        %v1111 = vld [vmem:[%s5 + $0x34] sm:$0xf]
        %v1112 = vld [vmem:[%s5 + $0x38] sm:$0xf]
        %v1113 = vld [vmem:[%s5 + $0x3c] sm:$0xf]
        %v1114 = vperm.slane %v948, 1
        %v1131 = vunpack.c.l.b16 %v1098
        %v1132 = vunpack.c.l.b16 %v1099
        %v1133 = vunpack.c.l.b16 %v1100
        %v1134 = vunpack.c.l.b16 %v1101
        %v1135 = vunpack.c.l.b16 %v1102
        %v1136 = vunpack.c.l.b16 %v1103
        %v1137 = vunpack.c.l.b16 %v1104
        %v1138 = vunpack.c.l.b16 %v1105
        %v1139 = vunpack.c.l.b16 %v1106
        %v1140 = vunpack.c.l.b16 %v1107
        %v1141 = vunpack.c.l.b16 %v1108
        %v1142 = vunpack.c.l.b16 %v1109
        %v1143 = vunpack.c.l.b16 %v1110
        %v1144 = vunpack.c.l.b16 %v1111
        %v1145 = vunpack.c.l.b16 %v1112
        %v1146 = vunpack.c.l.b16 %v1113
        %v1147 = vpack.c.b16 %v1132, %v1131
        %v1148 = vpack.c.b16 %v1134, %v1133
        %v1149 = vpack.c.b16 %v1136, %v1135
        %v1150 = vpack.c.b16 %v1138, %v1137
        %v1151 = vpack.c.b16 %v1140, %v1139
        %v1152 = vpack.c.b16 %v1142, %v1141
        %v1153 = vpack.c.b16 %v1144, %v1143
        %v1154 = vpack.c.b16 %v1146, %v1145
        %1163 = vmatpush.bf16.msra.mxu0 %v1154
        %1164 = vmatpush.bf16.msra.mxu0 %v1153
        %1165 = vmatpush.bf16.msra.mxu0 %v1152
        %1166 = vmatpush.bf16.msra.mxu0 %v1151
        %1167 = vmatpush.bf16.msra.mxu0 %v1150
        %1168 = vmatpush.bf16.msra.mxu0 %v1149
        %1169 = vmatpush.bf16.msra.mxu0 %v1148
        %1170 = vmatpush.bf16.msra.mxu0 %v1147
        %1171 = vmatmul.bf16.gmra.mxu0 %v1090
        %v1172 = vpop.f32.mrf.mxu0
        %v1173 = vadd.f32 %v1114, %v1172
        %v1174 = vpop.f32.mrf.mxu0
        %v1175 = vadd.f32 %v1114, %v1174
        %1176 = vmatmul.bf16.gmra.mxu0 %v1091
        %v1177 = vpop.f32.mrf.mxu0
        %v1178 = vadd.f32 %v1114, %v1177
        %v1179 = vpop.f32.mrf.mxu0
        %v1180 = vadd.f32 %v1114, %v1179
        %1181 = vmatmul.bf16.gmra.mxu0 %v1092
        %v1182 = vpop.f32.mrf.mxu0
        %v1183 = vadd.f32 %v1114, %v1182
        %v1184 = vpop.f32.mrf.mxu0
        %v1185 = vadd.f32 %v1114, %v1184
        %1186 = vmatmul.bf16.gmra.mxu0 %v1093
        %v1187 = vpop.f32.mrf.mxu0
        %v1188 = vadd.f32 %v1114, %v1187
        %v1189 = vpop.f32.mrf.mxu0
        %v1190 = vadd.f32 %v1114, %v1189
        %1191 = vmatmul.bf16.gmra.mxu0 %v1094
        %v1192 = vpop.f32.mrf.mxu0
        %v1193 = vadd.f32 %v1114, %v1192
        %v1194 = vpop.f32.mrf.mxu0
        %v1195 = vadd.f32 %v1114, %v1194
        %1196 = vmatmul.bf16.gmra.mxu0 %v1095
        %v1197 = vpop.f32.mrf.mxu0
        %v1198 = vadd.f32 %v1114, %v1197
        %v1199 = vpop.f32.mrf.mxu0
        %v1200 = vadd.f32 %v1114, %v1199
        %1201 = vmatmul.bf16.gmra.mxu0 %v1096
        %v1202 = vpop.f32.mrf.mxu0
        %v1203 = vadd.f32 %v1114, %v1202
        %v1204 = vpop.f32.mrf.mxu0
        %v1205 = vadd.f32 %v1114, %v1204
        %1206 = vmatmul.bf16.gmra.mxu0 %v1097
        %v1207 = vpop.f32.mrf.mxu0
        %v1208 = vadd.f32 %v1114, %v1207
        %v1209 = vpop.f32.mrf.mxu0
        %v1210 = vadd.f32 %v1114, %v1209
        %1211 = vdwg.mxu0
        %v1212 = vmax.f32 %v1173, 0.0
        %v1213 = vmax.f32 %v1175, 0.0
        %v1214 = vmax.f32 %v1178, 0.0
        %v1215 = vmax.f32 %v1180, 0.0
        %v1216 = vmax.f32 %v1183, 0.0
        %v1217 = vmax.f32 %v1185, 0.0
        %v1218 = vmax.f32 %v1188, 0.0
        %v1219 = vmax.f32 %v1190, 0.0
        %v1220 = vmax.f32 %v1193, 0.0
        %v1221 = vmax.f32 %v1195, 0.0
        %v1222 = vmax.f32 %v1198, 0.0
        %v1223 = vmax.f32 %v1200, 0.0
        %v1224 = vmax.f32 %v1203, 0.0
        %v1225 = vmax.f32 %v1205, 0.0
        %v1226 = vmax.f32 %v1208, 0.0
        %v1227 = vmax.f32 %v1210, 0.0
        %v1228 = vperm.slane %v948, 2
        %v1229 = vmul.f32 %v1212, %v1228
        %v1230 = vmul.f32 %v1213, %v1228
        %v1231 = vmul.f32 %v1214, %v1228
        %v1232 = vmul.f32 %v1215, %v1228
        %v1233 = vmul.f32 %v1216, %v1228
        %v1234 = vmul.f32 %v1217, %v1228
        %v1235 = vmul.f32 %v1218, %v1228
        %v1236 = vmul.f32 %v1219, %v1228
        %v1237 = vmul.f32 %v1220, %v1228
        %v1238 = vmul.f32 %v1221, %v1228
        %v1239 = vmul.f32 %v1222, %v1228
        %v1240 = vmul.f32 %v1223, %v1228
        %v1241 = vmul.f32 %v1224, %v1228
        %v1242 = vmul.f32 %v1225, %v1228
        %v1243 = vmul.f32 %v1226, %v1228
        %v1244 = vmul.f32 %v1227, %v1228
        %1245 = vadd.xlane.f32.xlu0 %v1229
        %v1246 = vpop.xlane.xlu0 %1245
        %1247 = vadd.xlane.f32.xlu0 %v1230
        %v1248 = vpop.xlane.xlu0 %1247
        %1249 = vadd.xlane.f32.xlu0 %v1231
        %v1250 = vpop.xlane.xlu0 %1249
        %1251 = vadd.xlane.f32.xlu0 %v1232
        %v1252 = vpop.xlane.xlu0 %1251
        %1253 = vadd.xlane.f32.xlu0 %v1233
        %v1254 = vpop.xlane.xlu0 %1253
        %1255 = vadd.xlane.f32.xlu0 %v1234
        %v1256 = vpop.xlane.xlu0 %1255
        %1257 = vadd.xlane.f32.xlu0 %v1235
        %v1258 = vpop.xlane.xlu0 %1257
        %1259 = vadd.xlane.f32.xlu0 %v1236
        %v1260 = vpop.xlane.xlu0 %1259
        %1261 = vadd.xlane.f32.xlu0 %v1237
        %v1262 = vpop.xlane.xlu0 %1261
        %1263 = vadd.xlane.f32.xlu0 %v1238
        %v1264 = vpop.xlane.xlu0 %1263
        %1265 = vadd.xlane.f32.xlu0 %v1239
        %v1266 = vpop.xlane.xlu0 %1265
        %1267 = vadd.xlane.f32.xlu0 %v1240
        %v1268 = vpop.xlane.xlu0 %1267
        %1269 = vadd.xlane.f32.xlu0 %v1241
        %v1270 = vpop.xlane.xlu0 %1269
        %1271 = vadd.xlane.f32.xlu0 %v1242
        %v1272 = vpop.xlane.xlu0 %1271
        %1273 = vadd.xlane.f32.xlu0 %v1243
        %v1274 = vpop.xlane.xlu0 %1273
        %1275 = vadd.xlane.f32.xlu0 %v1244
        %v1276 = vpop.xlane.xlu0 %1275
        %v1277 = vadd.f32 %v344, %v932
        %v1278 = vadd.f32 %v345, %v933
        %v1279 = vadd.f32 %v346, %v934
        %v1280 = vadd.f32 %v347, %v935
        %v1281 = vadd.f32 %v348, %v936
        %v1282 = vadd.f32 %v349, %v937
        %v1283 = vadd.f32 %v350, %v938
        %v1284 = vadd.f32 %v351, %v939
        %v1285 = vadd.f32 %v352, %v940
        %v1286 = vadd.f32 %v353, %v941
        %v1287 = vadd.f32 %v354, %v942
        %v1288 = vadd.f32 %v355, %v943
        %v1289 = vadd.f32 %v356, %v944
        %v1290 = vadd.f32 %v357, %v945
        %v1291 = vadd.f32 %v358, %v946
        %v1292 = vadd.f32 %v359, %v947
        %v1293 = vadd.f32 %v1277, %v1246
        %v1294 = vadd.f32 %v1278, %v1248
        %v1295 = vadd.f32 %v1279, %v1250
        %v1296 = vadd.f32 %v1280, %v1252
        %v1297 = vadd.f32 %v1281, %v1254
        %v1298 = vadd.f32 %v1282, %v1256
        %v1299 = vadd.f32 %v1283, %v1258
        %v1300 = vadd.f32 %v1284, %v1260
        %v1301 = vadd.f32 %v1285, %v1262
        %v1302 = vadd.f32 %v1286, %v1264
        %v1303 = vadd.f32 %v1287, %v1266
        %v1304 = vadd.f32 %v1288, %v1268
        %v1305 = vadd.f32 %v1289, %v1270
        %v1306 = vadd.f32 %v1290, %v1272
        %v1307 = vadd.f32 %v1291, %v1274
        %v1308 = vadd.f32 %v1292, %v1276
        %v1309 = vxor.u32 %v1293, 2147483648
        %v1310 = vxor.u32 %v1294, 2147483648
        %v1311 = vxor.u32 %v1295, 2147483648
        %v1312 = vxor.u32 %v1296, 2147483648
        %v1313 = vxor.u32 %v1297, 2147483648
        %v1314 = vxor.u32 %v1298, 2147483648
        %v1315 = vxor.u32 %v1299, 2147483648
        %v1316 = vxor.u32 %v1300, 2147483648
        %v1317 = vxor.u32 %v1301, 2147483648
        %v1318 = vxor.u32 %v1302, 2147483648
        %v1319 = vxor.u32 %v1303, 2147483648
        %v1320 = vxor.u32 %v1304, 2147483648
        %v1321 = vxor.u32 %v1305, 2147483648
        %v1322 = vxor.u32 %v1306, 2147483648
        %v1323 = vxor.u32 %v1307, 2147483648
        %v1324 = vxor.u32 %v1308, 2147483648
        %v1325 = vmul.f32 %v1309, 1.442695
        %v1326 = vpow.pop %v1325
        %v1327 = vmul.f32 %v1310, 1.442695
        %v1328 = vpow.pop %v1327
        %v1329 = vmul.f32 %v1311, 1.442695
        %v1330 = vpow.pop %v1329
        %v1331 = vmul.f32 %v1312, 1.442695
        %v1332 = vpow.pop %v1331
        %v1333 = vmul.f32 %v1313, 1.442695
        %v1334 = vpow.pop %v1333
        %v1335 = vmul.f32 %v1314, 1.442695
        %v1336 = vpow.pop %v1335
        %v1337 = vmul.f32 %v1315, 1.442695
        %v1338 = vpow.pop %v1337
        %v1339 = vmul.f32 %v1316, 1.442695
        %v1340 = vpow.pop %v1339
        %v1341 = vmul.f32 %v1317, 1.442695
        %v1342 = vpow.pop %v1341
        %v1343 = vmul.f32 %v1318, 1.442695
        %v1344 = vpow.pop %v1343
        %v1345 = vmul.f32 %v1319, 1.442695
        %v1346 = vpow.pop %v1345
        %v1347 = vmul.f32 %v1320, 1.442695
        %v1348 = vpow.pop %v1347
        %v1349 = vmul.f32 %v1321, 1.442695
        %v1350 = vpow.pop %v1349
        %v1351 = vmul.f32 %v1322, 1.442695
        %v1352 = vpow.pop %v1351
        %v1353 = vmul.f32 %v1323, 1.442695
        %v1354 = vpow.pop %v1353
        %v1355 = vmul.f32 %v1324, 1.442695
        %v1356 = vpow.pop %v1355
        %v1357 = vadd.f32 %v1326, 1.0
        %v1358 = vadd.f32 %v1328, 1.0
        %v1359 = vadd.f32 %v1330, 1.0
        %v1360 = vadd.f32 %v1332, 1.0
        %v1361 = vadd.f32 %v1334, 1.0
        %v1362 = vadd.f32 %v1336, 1.0
        %v1363 = vadd.f32 %v1338, 1.0
        %v1364 = vadd.f32 %v1340, 1.0
        %v1365 = vadd.f32 %v1342, 1.0
        %v1366 = vadd.f32 %v1344, 1.0
        %v1367 = vadd.f32 %v1346, 1.0
        %v1368 = vadd.f32 %v1348, 1.0
        %v1369 = vadd.f32 %v1350, 1.0
        %v1370 = vadd.f32 %v1352, 1.0
        %v1371 = vadd.f32 %v1354, 1.0
        %v1372 = vadd.f32 %v1356, 1.0
        %v1373 = vrcp.pop %v1357
        %v1374 = vmul.f32 %v1357, %v1373
        %v1375 = vsub.f32 1.0, %v1374
        %v1376 = vmul.f32 %v1373, %v1375
        %v1377 = vadd.f32 %v1373, %v1376
        %vm1378 = vweird.f32 %v1357
        %vm1379 = vweird.f32 %v1373
        %vm1380 = vmor %vm1378, %vm1379
        %v1381 = vsel %vm1380, %v1373, %v1377
        %v1382 = vand.u32 2147483647, %v1357
        %vm1383 = vcmp.eq.f32.partialorder %v1382, 8.507059e+37
        %v1384 = vand.u32 %v1357, 2147483648
        %v1385 = vor.u32 1.1754944e-38, %v1384
        %v1386 = vsel %vm1383, %v1385, %v1381
        %v1387 = vmul.f32 1.0, %v1386
        %v1388 = vrcp.pop %v1358
        %v1389 = vmul.f32 %v1358, %v1388
        %v1390 = vsub.f32 1.0, %v1389
        %v1391 = vmul.f32 %v1388, %v1390
        %v1392 = vadd.f32 %v1388, %v1391
        %vm1393 = vweird.f32 %v1358
        %vm1394 = vweird.f32 %v1388
        %vm1395 = vmor %vm1393, %vm1394
        %v1396 = vsel %vm1395, %v1388, %v1392
        %v1397 = vand.u32 2147483647, %v1358
        %vm1398 = vcmp.eq.f32.partialorder %v1397, 8.507059e+37
        %v1399 = vand.u32 %v1358, 2147483648
        %v1400 = vor.u32 1.1754944e-38, %v1399
        %v1401 = vsel %vm1398, %v1400, %v1396
        %v1402 = vmul.f32 1.0, %v1401
        %v1403 = vrcp.pop %v1359
        %v1404 = vmul.f32 %v1359, %v1403
        %v1405 = vsub.f32 1.0, %v1404
        %v1406 = vmul.f32 %v1403, %v1405
        %v1407 = vadd.f32 %v1403, %v1406
        %vm1408 = vweird.f32 %v1359
        %vm1409 = vweird.f32 %v1403
        %vm1410 = vmor %vm1408, %vm1409
        %v1411 = vsel %vm1410, %v1403, %v1407
        %v1412 = vand.u32 2147483647, %v1359
        %vm1413 = vcmp.eq.f32.partialorder %v1412, 8.507059e+37
        %v1414 = vand.u32 %v1359, 2147483648
        %v1415 = vor.u32 1.1754944e-38, %v1414
        %v1416 = vsel %vm1413, %v1415, %v1411
        %v1417 = vmul.f32 1.0, %v1416
        %v1418 = vrcp.pop %v1360
        %v1419 = vmul.f32 %v1360, %v1418
        %v1420 = vsub.f32 1.0, %v1419
        %v1421 = vmul.f32 %v1418, %v1420
        %v1422 = vadd.f32 %v1418, %v1421
        %vm1423 = vweird.f32 %v1360
        %vm1424 = vweird.f32 %v1418
        %vm1425 = vmor %vm1423, %vm1424
        %v1426 = vsel %vm1425, %v1418, %v1422
        %v1427 = vand.u32 2147483647, %v1360
        %vm1428 = vcmp.eq.f32.partialorder %v1427, 8.507059e+37
        %v1429 = vand.u32 %v1360, 2147483648
        %v1430 = vor.u32 1.1754944e-38, %v1429
        %v1431 = vsel %vm1428, %v1430, %v1426
        %v1432 = vmul.f32 1.0, %v1431
        %v1433 = vrcp.pop %v1361
        %v1434 = vmul.f32 %v1361, %v1433
        %v1435 = vsub.f32 1.0, %v1434
        %v1436 = vmul.f32 %v1433, %v1435
        %v1437 = vadd.f32 %v1433, %v1436
        %vm1438 = vweird.f32 %v1361
        %vm1439 = vweird.f32 %v1433
        %vm1440 = vmor %vm1438, %vm1439
        %v1441 = vsel %vm1440, %v1433, %v1437
        %v1442 = vand.u32 2147483647, %v1361
        %vm1443 = vcmp.eq.f32.partialorder %v1442, 8.507059e+37
        %v1444 = vand.u32 %v1361, 2147483648
        %v1445 = vor.u32 1.1754944e-38, %v1444
        %v1446 = vsel %vm1443, %v1445, %v1441
        %v1447 = vmul.f32 1.0, %v1446
        %v1448 = vrcp.pop %v1362
        %v1449 = vmul.f32 %v1362, %v1448
        %v1450 = vsub.f32 1.0, %v1449
        %v1451 = vmul.f32 %v1448, %v1450
        %v1452 = vadd.f32 %v1448, %v1451
        %vm1453 = vweird.f32 %v1362
        %vm1454 = vweird.f32 %v1448
        %vm1455 = vmor %vm1453, %vm1454
        %v1456 = vsel %vm1455, %v1448, %v1452
        %v1457 = vand.u32 2147483647, %v1362
        %vm1458 = vcmp.eq.f32.partialorder %v1457, 8.507059e+37
        %v1459 = vand.u32 %v1362, 2147483648
        %v1460 = vor.u32 1.1754944e-38, %v1459
        %v1461 = vsel %vm1458, %v1460, %v1456
        %v1462 = vmul.f32 1.0, %v1461
        %v1463 = vrcp.pop %v1363
        %v1464 = vmul.f32 %v1363, %v1463
        %v1465 = vsub.f32 1.0, %v1464
        %v1466 = vmul.f32 %v1463, %v1465
        %v1467 = vadd.f32 %v1463, %v1466
        %vm1468 = vweird.f32 %v1363
        %vm1469 = vweird.f32 %v1463
        %vm1470 = vmor %vm1468, %vm1469
        %v1471 = vsel %vm1470, %v1463, %v1467
        %v1472 = vand.u32 2147483647, %v1363
        %vm1473 = vcmp.eq.f32.partialorder %v1472, 8.507059e+37
        %v1474 = vand.u32 %v1363, 2147483648
        %v1475 = vor.u32 1.1754944e-38, %v1474
        %v1476 = vsel %vm1473, %v1475, %v1471
        %v1477 = vmul.f32 1.0, %v1476
        %v1478 = vrcp.pop %v1364
        %v1479 = vmul.f32 %v1364, %v1478
        %v1480 = vsub.f32 1.0, %v1479
        %v1481 = vmul.f32 %v1478, %v1480
        %v1482 = vadd.f32 %v1478, %v1481
        %vm1483 = vweird.f32 %v1364
        %vm1484 = vweird.f32 %v1478
        %vm1485 = vmor %vm1483, %vm1484
        %v1486 = vsel %vm1485, %v1478, %v1482
        %v1487 = vand.u32 2147483647, %v1364
        %vm1488 = vcmp.eq.f32.partialorder %v1487, 8.507059e+37
        %v1489 = vand.u32 %v1364, 2147483648
        %v1490 = vor.u32 1.1754944e-38, %v1489
        %v1491 = vsel %vm1488, %v1490, %v1486
        %v1492 = vmul.f32 1.0, %v1491
        %v1493 = vrcp.pop %v1365
        %v1494 = vmul.f32 %v1365, %v1493
        %v1495 = vsub.f32 1.0, %v1494
        %v1496 = vmul.f32 %v1493, %v1495
        %v1497 = vadd.f32 %v1493, %v1496
        %vm1498 = vweird.f32 %v1365
        %vm1499 = vweird.f32 %v1493
        %vm1500 = vmor %vm1498, %vm1499
        %v1501 = vsel %vm1500, %v1493, %v1497
        %v1502 = vand.u32 2147483647, %v1365
        %vm1503 = vcmp.eq.f32.partialorder %v1502, 8.507059e+37
        %v1504 = vand.u32 %v1365, 2147483648
        %v1505 = vor.u32 1.1754944e-38, %v1504
        %v1506 = vsel %vm1503, %v1505, %v1501
        %v1507 = vmul.f32 1.0, %v1506
        %v1508 = vrcp.pop %v1366
        %v1509 = vmul.f32 %v1366, %v1508
        %v1510 = vsub.f32 1.0, %v1509
        %v1511 = vmul.f32 %v1508, %v1510
        %v1512 = vadd.f32 %v1508, %v1511
        %vm1513 = vweird.f32 %v1366
        %vm1514 = vweird.f32 %v1508
        %vm1515 = vmor %vm1513, %vm1514
        %v1516 = vsel %vm1515, %v1508, %v1512
        %v1517 = vand.u32 2147483647, %v1366
        %vm1518 = vcmp.eq.f32.partialorder %v1517, 8.507059e+37
        %v1519 = vand.u32 %v1366, 2147483648
        %v1520 = vor.u32 1.1754944e-38, %v1519
        %v1521 = vsel %vm1518, %v1520, %v1516
        %v1522 = vmul.f32 1.0, %v1521
        %v1523 = vrcp.pop %v1367
        %v1524 = vmul.f32 %v1367, %v1523
        %v1525 = vsub.f32 1.0, %v1524
        %v1526 = vmul.f32 %v1523, %v1525
        %v1527 = vadd.f32 %v1523, %v1526
        %vm1528 = vweird.f32 %v1367
        %vm1529 = vweird.f32 %v1523
        %vm1530 = vmor %vm1528, %vm1529
        %v1531 = vsel %vm1530, %v1523, %v1527
        %v1532 = vand.u32 2147483647, %v1367
        %vm1533 = vcmp.eq.f32.partialorder %v1532, 8.507059e+37
        %v1534 = vand.u32 %v1367, 2147483648
        %v1535 = vor.u32 1.1754944e-38, %v1534
        %v1536 = vsel %vm1533, %v1535, %v1531
        %v1537 = vmul.f32 1.0, %v1536
        %v1538 = vrcp.pop %v1368
        %v1539 = vmul.f32 %v1368, %v1538
        %v1540 = vsub.f32 1.0, %v1539
        %v1541 = vmul.f32 %v1538, %v1540
        %v1542 = vadd.f32 %v1538, %v1541
        %vm1543 = vweird.f32 %v1368
        %vm1544 = vweird.f32 %v1538
        %vm1545 = vmor %vm1543, %vm1544
        %v1546 = vsel %vm1545, %v1538, %v1542
        %v1547 = vand.u32 2147483647, %v1368
        %vm1548 = vcmp.eq.f32.partialorder %v1547, 8.507059e+37
        %v1549 = vand.u32 %v1368, 2147483648
        %v1550 = vor.u32 1.1754944e-38, %v1549
        %v1551 = vsel %vm1548, %v1550, %v1546
        %v1552 = vmul.f32 1.0, %v1551
        %v1553 = vrcp.pop %v1369
        %v1554 = vmul.f32 %v1369, %v1553
        %v1555 = vsub.f32 1.0, %v1554
        %v1556 = vmul.f32 %v1553, %v1555
        %v1557 = vadd.f32 %v1553, %v1556
        %vm1558 = vweird.f32 %v1369
        %vm1559 = vweird.f32 %v1553
        %vm1560 = vmor %vm1558, %vm1559
        %v1561 = vsel %vm1560, %v1553, %v1557
        %v1562 = vand.u32 2147483647, %v1369
        %vm1563 = vcmp.eq.f32.partialorder %v1562, 8.507059e+37
        %v1564 = vand.u32 %v1369, 2147483648
        %v1565 = vor.u32 1.1754944e-38, %v1564
        %v1566 = vsel %vm1563, %v1565, %v1561
        %v1567 = vmul.f32 1.0, %v1566
        %v1568 = vrcp.pop %v1370
        %v1569 = vmul.f32 %v1370, %v1568
        %v1570 = vsub.f32 1.0, %v1569
        %v1571 = vmul.f32 %v1568, %v1570
        %v1572 = vadd.f32 %v1568, %v1571
        %vm1573 = vweird.f32 %v1370
        %vm1574 = vweird.f32 %v1568
        %vm1575 = vmor %vm1573, %vm1574
        %v1576 = vsel %vm1575, %v1568, %v1572
        %v1577 = vand.u32 2147483647, %v1370
        %vm1578 = vcmp.eq.f32.partialorder %v1577, 8.507059e+37
        %v1579 = vand.u32 %v1370, 2147483648
        %v1580 = vor.u32 1.1754944e-38, %v1579
        %v1581 = vsel %vm1578, %v1580, %v1576
        %v1582 = vmul.f32 1.0, %v1581
        %v1583 = vrcp.pop %v1371
        %v1584 = vmul.f32 %v1371, %v1583
        %v1585 = vsub.f32 1.0, %v1584
        %v1586 = vmul.f32 %v1583, %v1585
        %v1587 = vadd.f32 %v1583, %v1586
        %vm1588 = vweird.f32 %v1371
        %vm1589 = vweird.f32 %v1583
        %vm1590 = vmor %vm1588, %vm1589
        %v1591 = vsel %vm1590, %v1583, %v1587
        %v1592 = vand.u32 2147483647, %v1371
        %vm1593 = vcmp.eq.f32.partialorder %v1592, 8.507059e+37
        %v1594 = vand.u32 %v1371, 2147483648
        %v1595 = vor.u32 1.1754944e-38, %v1594
        %v1596 = vsel %vm1593, %v1595, %v1591
        %v1597 = vmul.f32 1.0, %v1596
        %v1598 = vrcp.pop %v1372
        %v1599 = vmul.f32 %v1372, %v1598
        %v1600 = vsub.f32 1.0, %v1599
        %v1601 = vmul.f32 %v1598, %v1600
        %v1602 = vadd.f32 %v1598, %v1601
        %vm1603 = vweird.f32 %v1372
        %vm1604 = vweird.f32 %v1598
        %vm1605 = vmor %vm1603, %vm1604
        %v1606 = vsel %vm1605, %v1598, %v1602
        %v1607 = vand.u32 2147483647, %v1372
        %vm1608 = vcmp.eq.f32.partialorder %v1607, 8.507059e+37
        %v1609 = vand.u32 %v1372, 2147483648
        %v1610 = vor.u32 1.1754944e-38, %v1609
        %v1611 = vsel %vm1608, %v1610, %v1606
        %v1612 = vmul.f32 1.0, %v1611
        %v1613 = vld [vmem:[%s7] sm:$0xff]
        %v1614 = vld [vmem:[%s7 + $0x8] sm:$0xff]
        %v1615 = vld [vmem:[%s7 + $0x10] sm:$0xff]
        %v1616 = vld [vmem:[%s7 + $0x18] sm:$0xff]
        %v1617 = vld [vmem:[%s7 + $0x20] sm:$0xff]
        %v1618 = vld [vmem:[%s7 + $0x28] sm:$0xff]
        %v1619 = vld [vmem:[%s7 + $0x30] sm:$0xff]
        %v1620 = vld [vmem:[%s7 + $0x38] sm:$0xff]
        %v1621 = vld [vmem:[%s7 + $0x40] sm:$0xff]
        %v1622 = vld [vmem:[%s7 + $0x48] sm:$0xff]
        %v1623 = vld [vmem:[%s7 + $0x50] sm:$0xff]
        %v1624 = vld [vmem:[%s7 + $0x58] sm:$0xff]
        %v1625 = vld [vmem:[%s7 + $0x60] sm:$0xff]
        %v1626 = vld [vmem:[%s7 + $0x68] sm:$0xff]
        %v1627 = vld [vmem:[%s7 + $0x70] sm:$0xff]
        %v1628 = vld [vmem:[%s7 + $0x78] sm:$0xff]
        %1630 = vset.pattern.permute.xlu0 8
        %1631 = vperm.xlu0 %1630, %v1387
        %v1632 = vpop.permute.xlu0 %1631
        %1635 = vset.pattern.permute.xlu0 8
        %1636 = vperm.xlu0 %1635, %v1402
        %v1637 = vpop.permute.xlu0 %1636
        %1640 = vset.pattern.permute.xlu0 8
        %1641 = vperm.xlu0 %1640, %v1417
        %v1642 = vpop.permute.xlu0 %1641
        %1645 = vset.pattern.permute.xlu0 8
        %1646 = vperm.xlu0 %1645, %v1432
        %v1647 = vpop.permute.xlu0 %1646
        %1650 = vset.pattern.permute.xlu0 8
        %1651 = vperm.xlu0 %1650, %v1447
        %v1652 = vpop.permute.xlu0 %1651
        %1655 = vset.pattern.permute.xlu0 8
        %1656 = vperm.xlu0 %1655, %v1462
        %v1657 = vpop.permute.xlu0 %1656
        %1660 = vset.pattern.permute.xlu0 8
        %1661 = vperm.xlu0 %1660, %v1477
        %v1662 = vpop.permute.xlu0 %1661
        %1665 = vset.pattern.permute.xlu0 8
        %1666 = vperm.xlu0 %1665, %v1492
        %v1667 = vpop.permute.xlu0 %1666
        %1670 = vset.pattern.permute.xlu0 8
        %1671 = vperm.xlu0 %1670, %v1507
        %v1672 = vpop.permute.xlu0 %1671
        %1675 = vset.pattern.permute.xlu0 8
        %1676 = vperm.xlu0 %1675, %v1522
        %v1677 = vpop.permute.xlu0 %1676
        %1680 = vset.pattern.permute.xlu0 8
        %1681 = vperm.xlu0 %1680, %v1537
        %v1682 = vpop.permute.xlu0 %1681
        %1685 = vset.pattern.permute.xlu0 8
        %1686 = vperm.xlu0 %1685, %v1552
        %v1687 = vpop.permute.xlu0 %1686
        %1690 = vset.pattern.permute.xlu0 8
        %1691 = vperm.xlu0 %1690, %v1567
        %v1692 = vpop.permute.xlu0 %1691
        %1695 = vset.pattern.permute.xlu0 8
        %1696 = vperm.xlu0 %1695, %v1582
        %v1697 = vpop.permute.xlu0 %1696
        %1700 = vset.pattern.permute.xlu0 8
        %1701 = vperm.xlu0 %1700, %v1597
        %v1702 = vpop.permute.xlu0 %1701
        %1705 = vset.pattern.permute.xlu0 8
        %1706 = vperm.xlu0 %1705, %v1612
        %v1707 = vpop.permute.xlu0 %1706
        %v1709 = vmul.f32 %v1632, %v1613
        %v1710 = vmul.f32 %v1637, %v1614
        %v1711 = vmul.f32 %v1642, %v1615
        %v1712 = vmul.f32 %v1647, %v1616
        %v1713 = vmul.f32 %v1652, %v1617
        %v1714 = vmul.f32 %v1657, %v1618
        %v1715 = vmul.f32 %v1662, %v1619
        %v1716 = vmul.f32 %v1667, %v1620
        %v1717 = vmul.f32 %v1672, %v1621
        %v1718 = vmul.f32 %v1677, %v1622
        %v1719 = vmul.f32 %v1682, %v1623
        %v1720 = vmul.f32 %v1687, %v1624
        %v1721 = vmul.f32 %v1692, %v1625
        %v1722 = vmul.f32 %v1697, %v1626
        %v1723 = vmul.f32 %v1702, %v1627
        %v1724 = vmul.f32 %v1707, %v1628
        %v1725 = vadd.f32 %v1709, %v1710
        %v1726 = vadd.f32 %v1725, %v1711
        %v1727 = vadd.f32 %v1726, %v1712
        %v1728 = vadd.f32 %v1727, %v1713
        %v1729 = vadd.f32 %v1728, %v1714
        %v1730 = vadd.f32 %v1729, %v1715
        %v1731 = vadd.f32 %v1730, %v1716
        %v1732 = vadd.f32 %v1731, %v1717
        %v1733 = vadd.f32 %v1732, %v1718
        %v1734 = vadd.f32 %v1733, %v1719
        %v1735 = vadd.f32 %v1734, %v1720
        %v1736 = vadd.f32 %v1735, %v1721
        %v1737 = vadd.f32 %v1736, %v1722
        %v1738 = vadd.f32 %v1737, %v1723
        %v1739 = vadd.f32 %v1738, %v1724
        %v1740 = vrot.slane %v1739, 4
        %v1741 = vadd.f32 %v1739, %v1740
        %v1742 = vrot.slane %v1741, 2
        %v1743 = vadd.f32 %v1741, %v1742
        %v1744 = vrot.slane %v1743, 1
        %v1745 = vadd.f32 %v1743, %v1744
        %1746 = vst [vmem:[%s314] sm:$0x1] %v1745
        %s1747 = sand.u32 %s208, 1
        %s1748 = scalar_lea.sflag [#allocation3], %s1747
        %s1749 = sand.u32 %s208, 1
        %s1750 = scalar_lea.vmem [#allocation2], %s1749
        // Predicated region
        $region53: #{deepfm_forward.1} parent=51 // pred_check
          %p1751 = pneg %p218
        $region54: #{deepfm_forward.1} parent=51 // pred_check_branch
          %1753 = sbr.rel (%p1751) target = $region56
        $region55: #{deepfm_forward.1} parent=51 // pred_region
          %1755 = vsyncadd %s1748, 0
          %s1756 = scalar_lea.hbm %s8, %s22
          %s1758 = sshll.u32 %s1750, 4
          %s1759 = int_to_ptr.vmem [resolvable:$true] %s1758
          %s1760 = sshll.u32 %s1756, 4
          %s1761 = int_to_ptr.hbm [resolvable:$true] %s1760
          %1763 = dma.vmem_to_hbm [thread:$0]  %s1759, 16, %s1761, %s1748
        $region56: #{deepfm_forward.1} parent=51 // pred_fallthru
          _
      $region52: #{deepfm_forward.1} parent=5 // pred_fallthru
        _
      %p1764 = scmp.le.s32.totalorder 2, %s17
      // Predicated region
      $region57: #{deepfm_forward.1} parent=5 // pred_check
        %p1765 = pneg %p1764
      $region58: #{deepfm_forward.1} parent=5 // pred_check_branch
        %1767 = sbr.rel (%p1765) target = $region60
      $region59: #{deepfm_forward.1} parent=5 // pred_region
        %s1768 = ssub.s32 %s17, 2
        // Predicated region
        $region61: #{deepfm_forward.1} parent=59 // pred_check
          %p1769 = pneg %p224
        $region62: #{deepfm_forward.1} parent=59 // pred_check_branch
          %1771 = sbr.rel (%p1769) target = $region64
        $region63: #{deepfm_forward.1} parent=59 // pred_region
          %s1772 = sand.u32 %s209, 1
          %s1773 = scalar_lea.sflag [#allocation3], %s1772
          %s1774 = sand.u32 %s209, 1
          %s1775 = scalar_lea.vmem [#allocation2], %s1774
          %1777 = dma.done %s1773, 16
        $region64: #{deepfm_forward.1} parent=59 // pred_fallthru
          _
      $region60: #{deepfm_forward.1} parent=5 // pred_fallthru
        _
    $region6: #{deepfm_forward.1} parent=1 // loop_footer
      %s21 = sadd.s32 1, %s17
    $region7: #{deepfm_forward.1} parent=1 // loop_footer_branch
      %16 = sbr.rel target = $region3
    $region8: #{deepfm_forward.1} parent=1 // loop_exit
      _
    %1778 = vsyncpa [#allocation3], 1
    %s1779 = scalar_lea.sflag [#allocation3], 1
    %1780 = vsyncpa %s1779, 1

</llo_original>
